<compile_context>
chip_gen: v5e
topology: v5e:2x2
jax: 0.10.0
libtpu: 0.0.40
codegen_flags: <defaults>
</compile_context>

<pallas_src>
import functools

import jax
import jax.numpy as jnp
from jax.experimental import pallas as pl
from jax.experimental.pallas import tpu as pltpu


def _round_up(x, m):
    return (x + m - 1) // m * m


def _vmem_budget_bytes():
    """~75% of physical VMEM: ~96 MiB on v5e/v6e (128 MiB), ~48 MiB on v7x (64 MiB)."""
    cap = 128 * 2**20
    try:
        info = pltpu.get_tpu_info()
        cap = int(getattr(info, "vmem_capacity_bytes", cap) or cap)
    except Exception:
        pass
    return int(cap * 3 // 4)


def _pick_row_tile(n_rows, target):
    """Prefer a row tile that divides n_rows (no activation padding)."""
    target = _round_up(max(target, 8), 8)
    if n_rows >= 8 and n_rows % 8 == 0:
        cand = min(target, n_rows) // 8 * 8
        while cand >= max(8, target // 2):
            if n_rows % cand == 0:
                return cand, n_rows
            cand -= 8
    tr = min(target, _round_up(n_rows, 8))
    return tr, _round_up(n_rows, tr)


def _pick_k_tile(dff_pad, target):
    """Largest multiple of 128 that divides dff_pad and is <= target."""
    target = max(128, target // 128 * 128)
    m = dff_pad // 128
    best = 128
    for d in range(1, m + 1):
        if m % d == 0 and 128 * d <= target:
            best = 128 * d
    return best


def _choose_config(n_rows, dm_pad, dff_pad, xbytes, wbytes, row_tile, k_tile,
                   budget, weights_resident=None):
    """Returns (tr, rows_pad, tk, nk, resident)."""
    small = 2 * 3 * dm_pad * 4 + 2 * dff_pad * 4        # gamma/beta/b2 + b1 (dbl-buffered)

    def resident_bytes(tr):
        return ((dm_pad * dff_pad + dff_pad * dm_pad) * wbytes   # W1+W2 single-buffered
                + 2 * 2 * tr * dm_pad * xbytes                   # x + out tiles (dbl-buffered)
                + tr * dff_pad * 4                               # relu(h) f32 temp
                + tr * dm_pad * (wbytes + 4)                     # xn / residual temps
                + small)

    def streamed_bytes(tr, tk):
        return (2 * 2 * tr * dm_pad * xbytes                     # x + out tiles
                + 2 * 2 * dm_pad * tk * wbytes                   # W1 + W2 slices (dbl-buffered)
                + tr * dm_pad * (wbytes + 4)                     # xn + acc scratch
                + tr * tk * 4                                    # relu(h) f32 temp
                + small)

    # ---- Path A: weights resident in VMEM for the whole grid (single k step) ----
    if weights_resident is not False:
        tr, rows_pad = _pick_row_tile(n_rows, row_tile)
        if rows_pad // tr < 2 and tr > 8:
            # keep >= 2 row tiles so both TensorCores get work (megacore / v7x)
            tr = _round_up((tr + 1) // 2, 8)
            rows_pad = _round_up(n_rows, tr)
        while tr > 8 and resident_bytes(tr) > budget:
            tr = _round_up(tr // 2, 8)
            rows_pad = _round_up(n_rows, tr)
        ok = (resident_bytes(tr) <= budget
              and (tr >= 128 or 2 * tr >= _round_up(n_rows, 8)))
        if ok or weights_resident is True:
            return tr, rows_pad, dff_pad, 1, True

    # ---- Path B: stream d_ff slices of W1/W2 with a VMEM accumulator -------------
    tk = _pick_k_tile(dff_pad, k_tile)
    tr, rows_pad = _pick_row_tile(n_rows, row_tile)
    while tr > 8 and streamed_bytes(tr, tk) > budget:
        if tk > 128:
            tk = _pick_k_tile(dff_pad, tk // 2)
        else:
            tr = _round_up(tr // 2, 8)
            rows_pad = _round_up(n_rows, tr)
    return tr, rows_pad, tk, dff_pad // tk, False


def _rff_kernel(x_ref, gamma_ref, beta_ref, w1_ref, b1_ref, w2_ref, b2_ref,
                o_ref, *scratch, eps, d_model, nk):
    """Grid = (row_tiles, nk). Axis 1 (when nk > 1) is the d_ff reduction axis."""

    def layer_norm(dtype):
        x = x_ref[...].astype(jnp.float32)
        dm_pad = x.shape[-1]
        inv_d = jnp.float32(1.0 / d_model)
        mean = jnp.sum(x, axis=-1, keepdims=True) * inv_d
        diff = x - mean
        if d_model != dm_pad:
            lane = jax.lax.broadcasted_iota(jnp.int32, (1, dm_pad), 1)
            diff = diff * (lane < d_model).astype(jnp.float32)
        var = jnp.sum(diff * diff, axis=-1, keepdims=True) * inv_d
        xn = diff * jax.lax.rsqrt(var + eps)
        return (xn * gamma_ref[...] + beta_ref[...]).astype(dtype)

    if nk == 1:
        # Weight-resident fast path: no scratch, no accumulator round trips.
        xn = layer_norm(w1_ref.dtype)
        h = jnp.dot(xn, w1_ref[...], preferred_element_type=jnp.float32)
        h = jnp.maximum(h + b1_ref[...], 0.0)
        y = jnp.dot(h.astype(w2_ref.dtype), w2_ref[...],
                    preferred_element_type=jnp.float32)
        o_ref[...] = (y + b2_ref[...] + x_ref[...].astype(jnp.float32)).astype(o_ref.dtype)
        return

    xn_ref, acc_ref = scratch
    k = pl.program_id(1)

    # --- per-row-tile init: LayerNorm once into matmul-dtype scratch ------------
    @pl.when(k == 0)
    def _():
        xn_ref[...] = layer_norm(xn_ref.dtype)

    # --- one d_ff slice of the FFN: relu(xn @ W1_k + b1_k) @ W2_k ---------------
    h = jnp.dot(xn_ref[...], w1_ref[...], preferred_element_type=jnp.float32)
    h = jnp.maximum(h + b1_ref[...], 0.0)
    partial = jnp.dot(h.astype(w2_ref.dtype), w2_ref[...],
                      preferred_element_type=jnp.float32)

    @pl.when(k == 0)
    def _():
        acc_ref[...] = partial          # first slice writes directly (no zero-init)

    @pl.when(k > 0)
    def _():
        acc_ref[...] += partial

    # --- finalize: bias + residual, single lane-dense store ---------------------
    @pl.when(k == nk - 1)
    def _():
        o_ref[...] = (acc_ref[...] + b2_ref[...]
                      + x_ref[...].astype(jnp.float32)).astype(o_ref.dtype)


def prepare_params(gamma, beta, w1, b1, w2, b2, *, matmul_dtype=jnp.bfloat16):
    """One-time pad/cast of module parameters (hoisted out of the per-call hot path)."""
    d_model, d_ff = w1.shape
    dm_pad = _round_up(d_model, 128)
    dff_pad = _round_up(d_ff, 128)
    f32 = jnp.float32
    return dict(
        d_model=d_model, d_ff=d_ff, dm_pad=dm_pad, dff_pad=dff_pad,
        matmul_dtype=jnp.dtype(matmul_dtype),
        gamma=jnp.pad(gamma.astype(f32), (0, dm_pad - d_model)).reshape(1, dm_pad),
        beta=jnp.pad(beta.astype(f32), (0, dm_pad - d_model)).reshape(1, dm_pad),
        b1=jnp.pad(b1.astype(f32), (0, dff_pad - d_ff)).reshape(1, dff_pad),
        b2=jnp.pad(b2.astype(f32), (0, dm_pad - d_model)).reshape(1, dm_pad),
        w1=jnp.pad(w1, ((0, dm_pad - d_model), (0, dff_pad - d_ff))).astype(matmul_dtype),
        w2=jnp.pad(w2, ((0, dff_pad - d_ff), (0, dm_pad - d_model))).astype(matmul_dtype),
    )


def residual_feed_forward(x, params, *, eps=1e-6, row_tile=512, k_tile=512,
                          weights_resident=None):
    """x: (B, T, d_model). params: output of prepare_params()."""
    B, T, d_model = x.shape
    assert d_model == params["d_model"], "d_model mismatch with prepared params"
    dm_pad, dff_pad = params["dm_pad"], params["dff_pad"]
    n_rows = B * T

    xbytes = jnp.dtype(x.dtype).itemsize
    wbytes = params["matmul_dtype"].itemsize
    budget = _vmem_budget_bytes()

    tr, rows_pad, tk, nk, resident = _choose_config(
        n_rows, dm_pad, dff_pad, xbytes, wbytes, row_tile, k_tile, budget,
        weights_resident=weights_resident)

    # ---- activations: avoid pad copies when already aligned --------------------
    x2 = x.reshape(n_rows, d_model)
    padded = (rows_pad != n_rows) or (dm_pad != d_model)
    if padded:
        x2 = jnp.pad(x2, ((0, rows_pad - n_rows), (0, dm_pad - d_model)))

    grid = (rows_pad // tr, nk)

    # ---- cost estimate: weight traffic depends on whether weights are resident ---
    weight_bytes = 2 * dm_pad * dff_pad * wbytes
    cost = pl.CostEstimate(
        flops=4 * rows_pad * dm_pad * dff_pad,
        transcendentals=rows_pad,
        bytes_accessed=(2 * n_rows * d_model * xbytes
                        + weight_bytes * (1 if nk == 1 else grid[0])))

    kernel = functools.partial(_rff_kernel, eps=eps, d_model=d_model, nk=nk)

    scratch = []
    if nk > 1:
        scratch = [pltpu.VMEM((tr, dm_pad), params["matmul_dtype"]),  # LayerNorm(x) cache
                   pltpu.VMEM((tr, dm_pad), jnp.float32)]             # FFN accumulator

    def run(single_buffer_weights):
        wkw = {"pipeline_mode": pl.Buffered(1)} if single_buffer_weights else {}
        return pl.pallas_call(
            kernel,
            out_shape=jax.ShapeDtypeStruct((rows_pad, dm_pad), x.dtype),
            grid_spec=pltpu.PrefetchScalarGridSpec(
                num_scalar_prefetch=0,
                grid=grid,
                in_specs=[
                    pl.BlockSpec((tr, dm_pad), lambda i, k: (i, 0)),          # x tile
                    pl.BlockSpec((1, dm_pad), lambda i, k: (0, 0)),           # gamma
                    pl.BlockSpec((1, dm_pad), lambda i, k: (0, 0)),           # beta
                    pl.BlockSpec((dm_pad, tk), lambda i, k: (0, k), **wkw),   # W1 slice
                    pl.BlockSpec((1, tk), lambda i, k: (0, k)),               # b1 slice
                    pl.BlockSpec((tk, dm_pad), lambda i, k: (k, 0), **wkw),   # W2 slice
                    pl.BlockSpec((1, dm_pad), lambda i, k: (0, 0)),           # b2
                ],
                out_specs=pl.BlockSpec((tr, dm_pad), lambda i, k: (i, 0)),
                scratch_shapes=scratch,
            ),
            compiler_params=pltpu.CompilerParams(
                dimension_semantics=("parallel", "arbitrary"),
                vmem_limit_bytes=budget),
            cost_estimate=cost,
        )(x2, params["gamma"], params["beta"], params["w1"], params["b1"],
          params["w2"], params["b2"])

    if resident:
        # Weights are grid-resident (constant block index); single-buffer them to halve
        # their VMEM footprint.  Fall back to default buffering if unsupported.
        try:
            out = run(True)
        except Exception:
            out = run(False)
    else:
        out = run(False)

    if padded:
        out = out[:n_rows, :d_model]
    return out.reshape(B, T, d_model)


def _reference(x, gamma, beta, w1, b1, w2, b2, eps=1e-6):
    xf = x.astype(jnp.float32)
    mean = jnp.mean(xf, axis=-1, keepdims=True)
    var = jnp.mean(jnp.square(xf - mean), axis=-1, keepdims=True)
    xn = (xf - mean) / jnp.sqrt(var + eps) * gamma + beta
    h = jnp.maximum(xn @ w1 + b1, 0.0)
    return (h @ w2 + b2 + xf).astype(x.dtype)


if __name__ == "__main__":
    key = jax.random.PRNGKey(0)
    kx, k1, k2, kb1, kb2, kx2 = jax.random.split(key, 6)

    # ---- small demo shapes (as in the PyTorch module) ---------------------------
    B, T, d_model, d_ff = 2, 8, 32, 64
    x = jax.random.normal(kx, (B, T, d_model), dtype=jnp.float32)
    w1 = jax.random.normal(k1, (d_model, d_ff), dtype=jnp.float32) * (1.0 / d_model) ** 0.5
    b1 = jax.random.normal(kb1, (d_ff,), dtype=jnp.float32) * 0.01
    w2 = jax.random.normal(k2, (d_ff, d_model), dtype=jnp.float32) * (1.0 / d_ff) ** 0.5
    b2 = jax.random.normal(kb2, (d_model,), dtype=jnp.float32) * 0.01
    gamma = jnp.ones((d_model,), dtype=jnp.float32)
    beta = jnp.zeros((d_model,), dtype=jnp.float32)

    ref = _reference(x, gamma, beta, w1, b1, w2, b2)

    # float32 matmul path, weight-resident fast path: tight tolerance
    params_f32 = prepare_params(gamma, beta, w1, b1, w2, b2, matmul_dtype=jnp.float32)
    out_f32 = jax.block_until_ready(residual_feed_forward(x, params_f32))
    assert out_f32.shape == (B, T, d_model)
    assert jnp.allclose(out_f32, ref, atol=1e-4, rtol=1e-4), "f32 mismatch vs reference"

    # bf16 matmul path (default / perf recommendation): loose tolerance
    params_bf16 = prepare_params(gamma, beta, w1, b1, w2, b2, matmul_dtype=jnp.bfloat16)
    out_bf16 = jax.block_until_ready(residual_feed_forward(x, params_bf16))
    assert jnp.allclose(out_bf16, ref, atol=5e-2, rtol=5e-2), "bf16 mismatch vs reference"

    # ---- ragged shapes + forced weight streaming (multi-step d_ff reduction) ----
    B2, T2, dm2, dff2 = 3, 7, 48, 300           # ragged rows, non-128 dims
    x_b = jax.random.normal(kx2, (B2, T2, dm2), dtype=jnp.float32)
    w1_b = jax.random.normal(k1, (dm2, dff2), dtype=jnp.float32) * (1.0 / dm2) ** 0.5
    b1_b = jax.random.normal(kb1, (dff2,), dtype=jnp.float32) * 0.01
    w2_b = jax.random.normal(k2, (dff2, dm2), dtype=jnp.float32) * (1.0 / dff2) ** 0.5
    b2_b = jax.random.normal(kb2, (dm2,), dtype=jnp.float32) * 0.01
    gamma_b = jnp.ones((dm2,), dtype=jnp.float32) * 0.9
    beta_b = jnp.ones((dm2,), dtype=jnp.float32) * 0.1

    params_b = prepare_params(gamma_b, beta_b, w1_b, b1_b, w2_b, b2_b,
                              matmul_dtype=jnp.float32)
    out_b = residual_feed_forward(x_b, params_b, k_tile=128,
                                  weights_resident=False)   # exercise streamed path (3 k-steps)
    out_b = jax.block_until_ready(out_b)
    ref_b = _reference(x_b, gamma_b, beta_b, w1_b, b1_b, w2_b, b2_b)
    assert jnp.allclose(out_b, ref_b, atol=1e-4, rtol=1e-4), "ragged mismatch vs reference"

    print("KERNEL_OK")
</pallas_src>

<mosaic_0001>
module attributes {stable_mosaic.version = 11 : i64} {
  func.func @_rff_kernel(%arg0: i32, %arg1: i32, %arg2: memref<8x128xf32, #tpu.memory_space<vmem>>, %arg3: memref<1x128xf32, #tpu.memory_space<vmem>>, %arg4: memref<1x128xf32, #tpu.memory_space<vmem>>, %arg5: memref<128x128xf32, #tpu.memory_space<vmem>>, %arg6: memref<1x128xf32, #tpu.memory_space<vmem>>, %arg7: memref<128x128xf32, #tpu.memory_space<vmem>>, %arg8: memref<1x128xf32, #tpu.memory_space<vmem>>, %arg9: memref<8x128xf32, #tpu.memory_space<vmem>>) attributes {dimension_semantics = [#tpu.dimension_semantics<parallel>, #tpu.dimension_semantics<arbitrary>], iteration_bounds = array<i64: 2, 1>, scalar_prefetch = 0 : i64, scratch_operands = 0 : i64, tpu.core_type = #tpu.core_type<tc>, window_params = [{transform_indices = @transform_0, window_bounds = array<i64: 8, 128>}, {pipeline_mode = #tpu.pipeline_mode<synchronous>, transform_indices = @transform_1, window_bounds = array<i64: 1, 128>}, {pipeline_mode = #tpu.pipeline_mode<synchronous>, transform_indices = @transform_2, window_bounds = array<i64: 1, 128>}, {pipeline_mode = #tpu.pipeline_mode<synchronous>, transform_indices = @transform_3, window_bounds = array<i64: 128, 128>}, {transform_indices = @transform_4, window_bounds = array<i64: 1, 128>}, {pipeline_mode = #tpu.pipeline_mode<synchronous>, transform_indices = @transform_5, window_bounds = array<i64: 128, 128>}, {pipeline_mode = #tpu.pipeline_mode<synchronous>, transform_indices = @transform_6, window_bounds = array<i64: 1, 128>}, {transform_indices = @transform_7, window_bounds = array<i64: 8, 128>}]} {
    %c0 = arith.constant 0 : index
    %c0_0 = arith.constant 0 : index
    %0 = vector.load %arg2[%c0, %c0_0] : memref<8x128xf32, #tpu.memory_space<vmem>>, vector<8x128xf32>
    %cst = arith.constant dense<0.000000e+00> : vector<8xf32>
    %1 = vector.multi_reduction <add>, %0, %cst [1] : vector<8x128xf32> to vector<8xf32>
    %2 = vector.shape_cast %1 : vector<8xf32> to vector<8x1xf32>
    %cst_1 = arith.constant 3.125000e-02 : f32
    %3 = vector.broadcast %cst_1 : f32 to vector<8x1xf32>
    %4 = arith.mulf %2, %3 : vector<8x1xf32>
    %5 = vector.broadcast %4 : vector<8x1xf32> to vector<8x128xf32>
    %6 = arith.subf %0, %5 : vector<8x128xf32>
    %7 = tpu.iota {dimensions = array<i32: 1>} : vector<1x128xi32>
    %c32_i32 = arith.constant 32 : i32
    %8 = vector.broadcast %c32_i32 : i32 to vector<1x128xi32>
    %9 = arith.cmpi slt, %7, %8 : vector<1x128xi32>
    %10 = arith.extui %9 : vector<1x128xi1> to vector<1x128xi32>
    %11 = arith.sitofp %10 : vector<1x128xi32> to vector<1x128xf32>
    %12 = vector.broadcast %11 : vector<1x128xf32> to vector<8x128xf32>
    %13 = arith.mulf %6, %12 : vector<8x128xf32>
    %14 = arith.mulf %13, %13 : vector<8x128xf32>
    %cst_2 = arith.constant dense<0.000000e+00> : vector<8xf32>
    %15 = vector.multi_reduction <add>, %14, %cst_2 [1] : vector<8x128xf32> to vector<8xf32>
    %16 = vector.shape_cast %15 : vector<8xf32> to vector<8x1xf32>
    %cst_3 = arith.constant 3.125000e-02 : f32
    %17 = vector.broadcast %cst_3 : f32 to vector<8x1xf32>
    %18 = arith.mulf %16, %17 : vector<8x1xf32>
    %cst_4 = arith.constant 9.99999997E-7 : f32
    %19 = vector.broadcast %cst_4 : f32 to vector<8x1xf32>
    %20 = arith.addf %18, %19 : vector<8x1xf32>
    %21 = math.rsqrt %20 : vector<8x1xf32>
    %22 = vector.broadcast %21 : vector<8x1xf32> to vector<8x128xf32>
    %23 = arith.mulf %13, %22 : vector<8x128xf32>
    %c0_5 = arith.constant 0 : index
    %c0_6 = arith.constant 0 : index
    %24 = vector.load %arg3[%c0_5, %c0_6] : memref<1x128xf32, #tpu.memory_space<vmem>>, vector<1x128xf32>
    %25 = vector.broadcast %24 : vector<1x128xf32> to vector<8x128xf32>
    %26 = arith.mulf %23, %25 : vector<8x128xf32>
    %c0_7 = arith.constant 0 : index
    %c0_8 = arith.constant 0 : index
    %27 = vector.load %arg4[%c0_7, %c0_8] : memref<1x128xf32, #tpu.memory_space<vmem>>, vector<1x128xf32>
    %28 = vector.broadcast %27 : vector<1x128xf32> to vector<8x128xf32>
    %29 = arith.addf %26, %28 : vector<8x128xf32>
    %c0_9 = arith.constant 0 : index
    %c0_10 = arith.constant 0 : index
    %30 = vector.load %arg5[%c0_9, %c0_10] : memref<128x128xf32, #tpu.memory_space<vmem>>, vector<128x128xf32>
    %cst_11 = arith.constant dense<0.000000e+00> : vector<8x128xf32>
    %31 = tpu.matmul %29, %30, %cst_11 {dimension_numbers = #tpu.dot_dimension_numbers<[1], [0], [0], [1], [0, 0, 1, 1], [], []>} : vector<8x128xf32>, vector<128x128xf32>, vector<8x128xf32> -> vector<8x128xf32>
    %c0_12 = arith.constant 0 : index
    %c0_13 = arith.constant 0 : index
    %32 = vector.load %arg6[%c0_12, %c0_13] : memref<1x128xf32, #tpu.memory_space<vmem>>, vector<1x128xf32>
    %33 = vector.broadcast %32 : vector<1x128xf32> to vector<8x128xf32>
    %34 = arith.addf %31, %33 : vector<8x128xf32>
    %cst_14 = arith.constant 0.000000e+00 : f32
    %35 = vector.broadcast %cst_14 : f32 to vector<8x128xf32>
    %36 = arith.maximumf %34, %35 : vector<8x128xf32>
    %c0_15 = arith.constant 0 : index
    %c0_16 = arith.constant 0 : index
    %37 = vector.load %arg7[%c0_15, %c0_16] : memref<128x128xf32, #tpu.memory_space<vmem>>, vector<128x128xf32>
    %cst_17 = arith.constant dense<0.000000e+00> : vector<8x128xf32>
    %38 = tpu.matmul %36, %37, %cst_17 {dimension_numbers = #tpu.dot_dimension_numbers<[1], [0], [0], [1], [0, 0, 1, 1], [], []>} : vector<8x128xf32>, vector<128x128xf32>, vector<8x128xf32> -> vector<8x128xf32>
    %c0_18 = arith.constant 0 : index
    %c0_19 = arith.constant 0 : index
    %39 = vector.load %arg8[%c0_18, %c0_19] : memref<1x128xf32, #tpu.memory_space<vmem>>, vector<1x128xf32>
    %40 = vector.broadcast %39 : vector<1x128xf32> to vector<8x128xf32>
    %41 = arith.addf %38, %40 : vector<8x128xf32>
    %c0_20 = arith.constant 0 : index
    %c0_21 = arith.constant 0 : index
    %42 = vector.load %arg2[%c0_20, %c0_21] : memref<8x128xf32, #tpu.memory_space<vmem>>, vector<8x128xf32>
    %43 = arith.addf %41, %42 : vector<8x128xf32>
    %c0_22 = arith.constant 0 : index
    %c0_23 = arith.constant 0 : index
    %44 = vector.load %arg9[%c0_22, %c0_23] : memref<8x128xf32, #tpu.memory_space<vmem>>, vector<8x128xf32>
    tpu.vector_store %arg9[%c0_22, %c0_23], %43 {strides = array<i32>} : memref<8x128xf32, #tpu.memory_space<vmem>>, vector<8x128xf32>,
    return
  }
  func.func @transform_0(%arg0: i32, %arg1: i32) -> (i32, i32) {
    %c0_i32 = arith.constant 0 : i32
    %c0_i32_0 = arith.constant 0 : i32
    return %arg0, %c0_i32 : i32, i32
  }
  func.func @transform_1(%arg0: i32, %arg1: i32) -> (i32, i32) {
    %c0_i32 = arith.constant 0 : i32
    %c0_i32_0 = arith.constant 0 : i32
    %c0_i32_1 = arith.constant 0 : i32
    return %c0_i32, %c0_i32_0 : i32, i32
  }
  func.func @transform_2(%arg0: i32, %arg1: i32) -> (i32, i32) {
    %c0_i32 = arith.constant 0 : i32
    %c0_i32_0 = arith.constant 0 : i32
    %c0_i32_1 = arith.constant 0 : i32
    return %c0_i32, %c0_i32_0 : i32, i32
  }
  func.func @transform_3(%arg0: i32, %arg1: i32) -> (i32, i32) {
    %c0_i32 = arith.constant 0 : i32
    %c0_i32_0 = arith.constant 0 : i32
    return %c0_i32, %arg1 : i32, i32
  }
  func.func @transform_4(%arg0: i32, %arg1: i32) -> (i32, i32) {
    %c0_i32 = arith.constant 0 : i32
    %c0_i32_0 = arith.constant 0 : i32
    return %c0_i32, %arg1 : i32, i32
  }
  func.func @transform_5(%arg0: i32, %arg1: i32) -> (i32, i32) {
    %c0_i32 = arith.constant 0 : i32
    %c0_i32_0 = arith.constant 0 : i32
    return %arg1, %c0_i32 : i32, i32
  }
  func.func @transform_6(%arg0: i32, %arg1: i32) -> (i32, i32) {
    %c0_i32 = arith.constant 0 : i32
    %c0_i32_0 = arith.constant 0 : i32
    %c0_i32_1 = arith.constant 0 : i32
    return %c0_i32, %c0_i32_0 : i32, i32
  }
  func.func @transform_7(%arg0: i32, %arg1: i32) -> (i32, i32) {
    %c0_i32 = arith.constant 0 : i32
    %c0_i32_0 = arith.constant 0 : i32
    return %arg0, %c0_i32 : i32, i32
  }
}

module attributes {stable_mosaic.version = 11 : i64} {
  func.func @_rff_kernel(%arg0: i32, %arg1: i32, %arg2: memref<8x128xf32, #tpu.memory_space<vmem>>, %arg3: memref<1x128xf32, #tpu.memory_space<vmem>>, %arg4: memref<1x128xf32, #tpu.memory_space<vmem>>, %arg5: memref<128x128xf32, #tpu.memory_space<vmem>>, %arg6: memref<1x128xf32, #tpu.memory_space<vmem>>, %arg7: memref<128x128xf32, #tpu.memory_space<vmem>>, %arg8: memref<1x128xf32, #tpu.memory_space<vmem>>, %arg9: memref<8x128xf32, #tpu.memory_space<vmem>>) attributes {dimension_semantics = [#tpu.dimension_semantics<parallel>, #tpu.dimension_semantics<arbitrary>], iteration_bounds = array<i64: 2, 1>, scalar_prefetch = 0 : i64, scratch_operands = 0 : i64, tpu.core_type = #tpu.core_type<tc>, window_params = [{transform_indices = @transform_0, window_bounds = array<i64: 8, 128>}, {pipeline_mode = #tpu.pipeline_mode<synchronous>, transform_indices = @transform_1, window_bounds = array<i64: 1, 128>}, {pipeline_mode = #tpu.pipeline_mode<synchronous>, transform_indices = @transform_2, window_bounds = array<i64: 1, 128>}, {transform_indices = @transform_3, window_bounds = array<i64: 128, 128>}, {transform_indices = @transform_4, window_bounds = array<i64: 1, 128>}, {transform_indices = @transform_5, window_bounds = array<i64: 128, 128>}, {pipeline_mode = #tpu.pipeline_mode<synchronous>, transform_indices = @transform_6, window_bounds = array<i64: 1, 128>}, {transform_indices = @transform_7, window_bounds = array<i64: 8, 128>}]} {
    %c0 = arith.constant 0 : index
    %c0_0 = arith.constant 0 : index
    %0 = vector.load %arg2[%c0, %c0_0] : memref<8x128xf32, #tpu.memory_space<vmem>>, vector<8x128xf32>
    %cst = arith.constant dense<0.000000e+00> : vector<8xf32>
    %1 = vector.multi_reduction <add>, %0, %cst [1] : vector<8x128xf32> to vector<8xf32>
    %2 = vector.shape_cast %1 : vector<8xf32> to vector<8x1xf32>
    %cst_1 = arith.constant 3.125000e-02 : f32
    %3 = vector.broadcast %cst_1 : f32 to vector<8x1xf32>
    %4 = arith.mulf %2, %3 : vector<8x1xf32>
    %5 = vector.broadcast %4 : vector<8x1xf32> to vector<8x128xf32>
    %6 = arith.subf %0, %5 : vector<8x128xf32>
    %7 = tpu.iota {dimensions = array<i32: 1>} : vector<1x128xi32>
    %c32_i32 = arith.constant 32 : i32
    %8 = vector.broadcast %c32_i32 : i32 to vector<1x128xi32>
    %9 = arith.cmpi slt, %7, %8 : vector<1x128xi32>
    %10 = arith.extui %9 : vector<1x128xi1> to vector<1x128xi32>
    %11 = arith.sitofp %10 : vector<1x128xi32> to vector<1x128xf32>
    %12 = vector.broadcast %11 : vector<1x128xf32> to vector<8x128xf32>
    %13 = arith.mulf %6, %12 : vector<8x128xf32>
    %14 = arith.mulf %13, %13 : vector<8x128xf32>
    %cst_2 = arith.constant dense<0.000000e+00> : vector<8xf32>
    %15 = vector.multi_reduction <add>, %14, %cst_2 [1] : vector<8x128xf32> to vector<8xf32>
    %16 = vector.shape_cast %15 : vector<8xf32> to vector<8x1xf32>
    %cst_3 = arith.constant 3.125000e-02 : f32
    %17 = vector.broadcast %cst_3 : f32 to vector<8x1xf32>
    %18 = arith.mulf %16, %17 : vector<8x1xf32>
    %cst_4 = arith.constant 9.99999997E-7 : f32
    %19 = vector.broadcast %cst_4 : f32 to vector<8x1xf32>
    %20 = arith.addf %18, %19 : vector<8x1xf32>
    %21 = math.rsqrt %20 : vector<8x1xf32>
    %22 = vector.broadcast %21 : vector<8x1xf32> to vector<8x128xf32>
    %23 = arith.mulf %13, %22 : vector<8x128xf32>
    %c0_5 = arith.constant 0 : index
    %c0_6 = arith.constant 0 : index
    %24 = vector.load %arg3[%c0_5, %c0_6] : memref<1x128xf32, #tpu.memory_space<vmem>>, vector<1x128xf32>
    %25 = vector.broadcast %24 : vector<1x128xf32> to vector<8x128xf32>
    %26 = arith.mulf %23, %25 : vector<8x128xf32>
    %c0_7 = arith.constant 0 : index
    %c0_8 = arith.constant 0 : index
    %27 = vector.load %arg4[%c0_7, %c0_8] : memref<1x128xf32, #tpu.memory_space<vmem>>, vector<1x128xf32>
    %28 = vector.broadcast %27 : vector<1x128xf32> to vector<8x128xf32>
    %29 = arith.addf %26, %28 : vector<8x128xf32>
    %c0_9 = arith.constant 0 : index
    %c0_10 = arith.constant 0 : index
    %30 = vector.load %arg5[%c0_9, %c0_10] : memref<128x128xf32, #tpu.memory_space<vmem>>, vector<128x128xf32>
    %cst_11 = arith.constant dense<0.000000e+00> : vector<8x128xf32>
    %31 = tpu.matmul %29, %30, %cst_11 {dimension_numbers = #tpu.dot_dimension_numbers<[1], [0], [0], [1], [0, 0, 1, 1], [], []>} : vector<8x128xf32>, vector<128x128xf32>, vector<8x128xf32> -> vector<8x128xf32>
    %c0_12 = arith.constant 0 : index
    %c0_13 = arith.constant 0 : index
    %32 = vector.load %arg6[%c0_12, %c0_13] : memref<1x128xf32, #tpu.memory_space<vmem>>, vector<1x128xf32>
    %33 = vector.broadcast %32 : vector<1x128xf32> to vector<8x128xf32>
    %34 = arith.addf %31, %33 : vector<8x128xf32>
    %cst_14 = arith.constant 0.000000e+00 : f32
    %35 = vector.broadcast %cst_14 : f32 to vector<8x128xf32>
    %36 = arith.maximumf %34, %35 : vector<8x128xf32>
    %c0_15 = arith.constant 0 : index
    %c0_16 = arith.constant 0 : index
    %37 = vector.load %arg7[%c0_15, %c0_16] : memref<128x128xf32, #tpu.memory_space<vmem>>, vector<128x128xf32>
    %cst_17 = arith.constant dense<0.000000e+00> : vector<8x128xf32>
    %38 = tpu.matmul %36, %37, %cst_17 {dimension_numbers = #tpu.dot_dimension_numbers<[1], [0], [0], [1], [0, 0, 1, 1], [], []>} : vector<8x128xf32>, vector<128x128xf32>, vector<8x128xf32> -> vector<8x128xf32>
    %c0_18 = arith.constant 0 : index
    %c0_19 = arith.constant 0 : index
    %39 = vector.load %arg8[%c0_18, %c0_19] : memref<1x128xf32, #tpu.memory_space<vmem>>, vector<1x128xf32>
    %40 = vector.broadcast %39 : vector<1x128xf32> to vector<8x128xf32>
    %41 = arith.addf %38, %40 : vector<8x128xf32>
    %c0_20 = arith.constant 0 : index
    %c0_21 = arith.constant 0 : index
    %42 = vector.load %arg2[%c0_20, %c0_21] : memref<8x128xf32, #tpu.memory_space<vmem>>, vector<8x128xf32>
    %43 = arith.addf %41, %42 : vector<8x128xf32>
    %c0_22 = arith.constant 0 : index
    %c0_23 = arith.constant 0 : index
    %44 = vector.load %arg9[%c0_22, %c0_23] : memref<8x128xf32, #tpu.memory_space<vmem>>, vector<8x128xf32>
    tpu.vector_store %arg9[%c0_22, %c0_23], %43 {strides = array<i32>} : memref<8x128xf32, #tpu.memory_space<vmem>>, vector<8x128xf32>,
    return
  }
  func.func @transform_0(%arg0: i32, %arg1: i32) -> (i32, i32) {
    %c0_i32 = arith.constant 0 : i32
    %c0_i32_0 = arith.constant 0 : i32
    return %arg0, %c0_i32 : i32, i32
  }
  func.func @transform_1(%arg0: i32, %arg1: i32) -> (i32, i32) {
    %c0_i32 = arith.constant 0 : i32
    %c0_i32_0 = arith.constant 0 : i32
    %c0_i32_1 = arith.constant 0 : i32
    return %c0_i32, %c0_i32_0 : i32, i32
  }
  func.func @transform_2(%arg0: i32, %arg1: i32) -> (i32, i32) {
    %c0_i32 = arith.constant 0 : i32
    %c0_i32_0 = arith.constant 0 : i32
    %c0_i32_1 = arith.constant 0 : i32
    return %c0_i32, %c0_i32_0 : i32, i32
  }
  func.func @transform_3(%arg0: i32, %arg1: i32) -> (i32, i32) {
    %c0_i32 = arith.constant 0 : i32
    %c0_i32_0 = arith.constant 0 : i32
    return %c0_i32, %arg1 : i32, i32
  }
  func.func @transform_4(%arg0: i32, %arg1: i32) -> (i32, i32) {
    %c0_i32 = arith.constant 0 : i32
    %c0_i32_0 = arith.constant 0 : i32
    return %c0_i32, %arg1 : i32, i32
  }
  func.func @transform_5(%arg0: i32, %arg1: i32) -> (i32, i32) {
    %c0_i32 = arith.constant 0 : i32
    %c0_i32_0 = arith.constant 0 : i32
    return %arg1, %c0_i32 : i32, i32
  }
  func.func @transform_6(%arg0: i32, %arg1: i32) -> (i32, i32) {
    %c0_i32 = arith.constant 0 : i32
    %c0_i32_0 = arith.constant 0 : i32
    %c0_i32_1 = arith.constant 0 : i32
    return %c0_i32, %c0_i32_0 : i32, i32
  }
  func.func @transform_7(%arg0: i32, %arg1: i32) -> (i32, i32) {
    %c0_i32 = arith.constant 0 : i32
    %c0_i32_0 = arith.constant 0 : i32
    return %arg0, %c0_i32 : i32, i32
  }
}

</mosaic_0001>

<llo_original>
// kernel: tpu_custom_call.1
$region0: #{tpu_custom_call.1}
  #allocation0 [shape = 'u32[]', space=smem, size = 0x4, offset = 0x4, fixed_abs, tag = 'smem constant byte address 0x4 - core index']
  #allocation1 [shape = 'u32[72,128]{1,0:T(1,128)}', space=vmem, size = 0x9000, scoped, tag = 'internal scratch']
  %s0 = inlined_call_operand.hbm [shape: f32[16,128], index: 0, kind: input, shape index: {}]
  %s1 = inlined_call_operand.hbm [shape: f32[1,128], index: 1, kind: input, shape index: {}]
  %s2 = inlined_call_operand.vmem [shape: f32[1,128], index: 2, kind: input, shape index: {}]
  %s3 = inlined_call_operand.hbm [shape: f32[128,128], index: 3, kind: input, shape index: {}]
  %s4 = inlined_call_operand.vmem [shape: f32[1,128], index: 4, kind: input, shape index: {}]
  %s5 = inlined_call_operand.hbm [shape: f32[128,128], index: 5, kind: input, shape index: {}]
  %s6 = inlined_call_operand.vmem [shape: f32[1,128], index: 6, kind: input, shape index: {}]
  %s7 = inlined_call_operand.hbm [shape: f32[16,128], index: 7, kind: output, shape index: {}]
  %s8 = sld [smem:[#allocation0]]
  $region77: #{tpu_custom_call.1} parent=0
    _
  %s10 = ssub.s32 1, %s8
  %s11 = scalar_select 0, %s10, %s8
  $region1: #{tpu_custom_call.1} parent=0
    #allocation2 [shape = 'u8[8192]{0}', space=vmem, size = 0x2000, scoped, tag = 'input window, operand 0']
    #allocation3 [shape = 's32[2]{0}', space=sflag, size = 0x8, scoped, tag = 'scoped memory for tpu_custom_call.1']
    #allocation4 [shape = 's32[2]{0}', space=sflag, size = 0x8, scoped, tag = 'scoped memory for tpu_custom_call.1']
    #allocation5 [shape = 'u8[512]{0}', space=vmem, size = 0x400, scoped, tag = 'input window, operand 1, single buffered']
    #allocation6 [shape = 's32[1]{0}', space=sflag, size = 0x4, scoped, tag = 'scoped memory for tpu_custom_call.1']
    #allocation7 [shape = 'u8[65536]{0}', space=vmem, size = 0x10000, scoped, tag = 'input window, operand 3, single buffered']
    #allocation8 [shape = 'u8[65536]{0}', space=vmem, size = 0x10000, scoped, tag = 'input window, operand 5, single buffered']
    #allocation9 [shape = 's32[1]{0}', space=sflag, size = 0x4, scoped, tag = 'scoped memory for tpu_custom_call.1']
    #allocation10 [shape = 'u8[8192]{0}', space=vmem, size = 0x2000, scoped, tag = 'output window, operand 0']
    %12 = vsyncpa [#allocation3], 0
    %s13 = scalar_lea.sflag [#allocation3], 1
    %14 = vsyncpa %s13, 0
    %15 = vsyncpa [#allocation6], 0
    %16 = vsyncpa [#allocation9], 0
    %17 = vsyncpa [#allocation4], 0
    %s18 = scalar_lea.sflag [#allocation4], 1
    %19 = vsyncpa %s18, 0
    loop: start=0, step=1, limit=4
    $region2: #{tpu_custom_call.1} parent=1 // loop_pre_header
      _
    $region3: #{tpu_custom_call.1} parent=1 // loop_header
      %s21 = sphi 0, %s25
      %p22 = scmp.ge.s32.totalorder %s21, 4
      %s28 = sphi 0, %s40
      %s29 = sphi 0, %s36
      %s30 = sphi 0, %s28
      %s31 = sphi 0, %s29
      %s32 = sphi 0, %s30
      %s33 = sphi 0, %s31
      %s43 = sphi 0, %s45
      %s46 = sphi 0, %s43
      %s47 = sphi 0, %s46
      %s63 = sphi 0, %s47
      %s67 = sphi 0, %s67
      %s69 = sphi 0, %s67
      %s70 = sphi 0, %s69
      %s84 = sphi 0, %s70
      %s88 = sphi 0, %s88
      %s90 = sphi 0, %s88
      %s91 = sphi 0, %s90
      %s105 = sphi 0, %s91
      %s111 = sphi 0, %s113
      %s114 = sphi 0, %s111
      %s115 = sphi 0, %s114
      %s131 = sphi 0, %s115
      %s137 = sphi 0, %s139
      %s140 = sphi 0, %s137
      %s141 = sphi 0, %s140
      %s157 = sphi 0, %s141
      %s163 = sphi 0, %s165
      %s166 = sphi 0, %s163
      %s167 = sphi 0, %s166
      %s183 = sphi 0, %s167
      %s187 = sphi 0, %s187
      %s189 = sphi 0, %s187
      %s190 = sphi 0, %s189
      %s204 = sphi 0, %s190
      %s210 = sphi 0, %s212
      %s213 = sphi 0, %s210
      %s214 = sphi 0, %s213
      %s230 = sphi 0, %s214
    $region4: #{tpu_custom_call.1} parent=1 // loop_header_branch
      %24 = sbr.rel (%p22) target = $region8
    $region5: #{tpu_custom_call.1} parent=1 // loop_body
      %s26 = ssub.s32 %s21, 1
      %s27 = ssub.s32 %s21, 2
      %s34 = sadd.s32 1, %s29
      %p35 = scmp.ge.s32.totalorder %s34, 1
      %s36 = scalar_select %p35, 0, %s34
      %s37 = sadd.s32 1, %s28
      %s38 = scalar_select %p35, %s37, %s28
      %p39 = scmp.ge.s32.totalorder %s38, 2
      %s40 = scalar_select %p39, 0, %s38
      %s41 = ssub.s32 %s28, %s40
      %p42 = scmp.eq.s32.totalorder %s41, 0
      %s44 = sadd.s32 %s43, 1
      %s45 = scalar_select %p42, %s43, %s44
      %p48 = pneg %p42
      %p49 = scmp.eq.s32.totalorder %s21, 1
      %p50 = por %p48, %p49
      %p51 = scmp.ne.s32.totalorder %s43, %s46
      %p52 = scmp.eq.s32.totalorder %s21, 0
      %p53 = por %p51, %p52
      %p54 = scmp.ne.s32.totalorder %s43, %s46
      %p55 = scmp.eq.s32.totalorder %s26, 1
      %p56 = por %p54, %p55
      %p57 = scmp.ne.s32.totalorder %s46, %s47
      %p58 = scmp.eq.s32.totalorder %s26, 0
      %p59 = por %p57, %p58
      %p60 = scmp.ne.s32.totalorder %s46, %s47
      %p61 = scmp.eq.s32.totalorder %s27, 1
      %p62 = por %p60, %p61
      %p64 = scmp.ne.s32.totalorder %s47, %s63
      %p65 = scmp.eq.s32.totalorder %s27, 0
      %p66 = por %p64, %p65
      %s68 = sadd.s32 %s67, 1
      %p71 = scmp.eq.s32.totalorder %s21, 1
      %p72 = scmp.ne.s32.totalorder %s67, %s69
      %p73 = scmp.eq.s32.totalorder %s21, 0
      %p74 = por %p72, %p73
      %p75 = scmp.ne.s32.totalorder %s67, %s69
      %p76 = scmp.eq.s32.totalorder %s26, 1
      %p77 = por %p75, %p76
      %p78 = scmp.ne.s32.totalorder %s69, %s70
      %p79 = scmp.eq.s32.totalorder %s26, 0
      %p80 = por %p78, %p79
      %p81 = scmp.ne.s32.totalorder %s69, %s70
      %p82 = scmp.eq.s32.totalorder %s27, 1
      %p83 = por %p81, %p82
      %p85 = scmp.ne.s32.totalorder %s70, %s84
      %p86 = scmp.eq.s32.totalorder %s27, 0
      %p87 = por %p85, %p86
      %s89 = sadd.s32 %s88, 1
      %p92 = scmp.eq.s32.totalorder %s21, 1
      %p93 = scmp.ne.s32.totalorder %s88, %s90
      %p94 = scmp.eq.s32.totalorder %s21, 0
      %p95 = por %p93, %p94
      %p96 = scmp.ne.s32.totalorder %s88, %s90
      %p97 = scmp.eq.s32.totalorder %s26, 1
      %p98 = por %p96, %p97
      %p99 = scmp.ne.s32.totalorder %s90, %s91
      %p100 = scmp.eq.s32.totalorder %s26, 0
      %p101 = por %p99, %p100
      %p102 = scmp.ne.s32.totalorder %s90, %s91
      %p103 = scmp.eq.s32.totalorder %s27, 1
      %p104 = por %p102, %p103
      %p106 = scmp.ne.s32.totalorder %s91, %s105
      %p107 = scmp.eq.s32.totalorder %s27, 0
      %p108 = por %p106, %p107
      %s109 = ssub.s32 %s29, %s36
      %p110 = scmp.eq.s32.totalorder %s109, 0
      %s112 = sadd.s32 %s111, 1
      %s113 = scalar_select %p110, %s111, %s112
      %p116 = pneg %p110
      %p117 = scmp.eq.s32.totalorder %s21, 1
      %p118 = por %p116, %p117
      %p119 = scmp.ne.s32.totalorder %s111, %s114
      %p120 = scmp.eq.s32.totalorder %s21, 0
      %p121 = por %p119, %p120
      %p122 = scmp.ne.s32.totalorder %s111, %s114
      %p123 = scmp.eq.s32.totalorder %s26, 1
      %p124 = por %p122, %p123
      %p125 = scmp.ne.s32.totalorder %s114, %s115
      %p126 = scmp.eq.s32.totalorder %s26, 0
      %p127 = por %p125, %p126
      %p128 = scmp.ne.s32.totalorder %s114, %s115
      %p129 = scmp.eq.s32.totalorder %s27, 1
      %p130 = por %p128, %p129
      %p132 = scmp.ne.s32.totalorder %s115, %s131
      %p133 = scmp.eq.s32.totalorder %s27, 0
      %p134 = por %p132, %p133
      %s135 = ssub.s32 %s29, %s36
      %p136 = scmp.eq.s32.totalorder %s135, 0
      %s138 = sadd.s32 %s137, 1
      %s139 = scalar_select %p136, %s137, %s138
      %p142 = pneg %p136
      %p143 = scmp.eq.s32.totalorder %s21, 1
      %p144 = por %p142, %p143
      %p145 = scmp.ne.s32.totalorder %s137, %s140
      %p146 = scmp.eq.s32.totalorder %s21, 0
      %p147 = por %p145, %p146
      %p148 = scmp.ne.s32.totalorder %s137, %s140
      %p149 = scmp.eq.s32.totalorder %s26, 1
      %p150 = por %p148, %p149
      %p151 = scmp.ne.s32.totalorder %s140, %s141
      %p152 = scmp.eq.s32.totalorder %s26, 0
      %p153 = por %p151, %p152
      %p154 = scmp.ne.s32.totalorder %s140, %s141
      %p155 = scmp.eq.s32.totalorder %s27, 1
      %p156 = por %p154, %p155
      %p158 = scmp.ne.s32.totalorder %s141, %s157
      %p159 = scmp.eq.s32.totalorder %s27, 0
      %p160 = por %p158, %p159
      %s161 = ssub.s32 %s29, %s36
      %p162 = scmp.eq.s32.totalorder %s161, 0
      %s164 = sadd.s32 %s163, 1
      %s165 = scalar_select %p162, %s163, %s164
      %p168 = pneg %p162
      %p169 = scmp.eq.s32.totalorder %s21, 1
      %p170 = por %p168, %p169
      %p171 = scmp.ne.s32.totalorder %s163, %s166
      %p172 = scmp.eq.s32.totalorder %s21, 0
      %p173 = por %p171, %p172
      %p174 = scmp.ne.s32.totalorder %s163, %s166
      %p175 = scmp.eq.s32.totalorder %s26, 1
      %p176 = por %p174, %p175
      %p177 = scmp.ne.s32.totalorder %s166, %s167
      %p178 = scmp.eq.s32.totalorder %s26, 0
      %p179 = por %p177, %p178
      %p180 = scmp.ne.s32.totalorder %s166, %s167
      %p181 = scmp.eq.s32.totalorder %s27, 1
      %p182 = por %p180, %p181
      %p184 = scmp.ne.s32.totalorder %s167, %s183
      %p185 = scmp.eq.s32.totalorder %s27, 0
      %p186 = por %p184, %p185
      %s188 = sadd.s32 %s187, 1
      %p191 = scmp.eq.s32.totalorder %s21, 1
      %p192 = scmp.ne.s32.totalorder %s187, %s189
      %p193 = scmp.eq.s32.totalorder %s21, 0
      %p194 = por %p192, %p193
      %p195 = scmp.ne.s32.totalorder %s187, %s189
      %p196 = scmp.eq.s32.totalorder %s26, 1
      %p197 = por %p195, %p196
      %p198 = scmp.ne.s32.totalorder %s189, %s190
      %p199 = scmp.eq.s32.totalorder %s26, 0
      %p200 = por %p198, %p199
      %p201 = scmp.ne.s32.totalorder %s189, %s190
      %p202 = scmp.eq.s32.totalorder %s27, 1
      %p203 = por %p201, %p202
      %p205 = scmp.ne.s32.totalorder %s190, %s204
      %p206 = scmp.eq.s32.totalorder %s27, 0
      %p207 = por %p205, %p206
      %s208 = ssub.s32 %s28, %s40
      %p209 = scmp.eq.s32.totalorder %s208, 0
      %s211 = sadd.s32 %s210, 1
      %s212 = scalar_select %p209, %s210, %s211
      %p215 = pneg %p209
      %p216 = scmp.eq.s32.totalorder %s21, 1
      %p217 = por %p215, %p216
      %p218 = scmp.ne.s32.totalorder %s210, %s213
      %p219 = scmp.eq.s32.totalorder %s21, 0
      %p220 = por %p218, %p219
      %p221 = scmp.ne.s32.totalorder %s210, %s213
      %p222 = scmp.eq.s32.totalorder %s26, 1
      %p223 = por %p221, %p222
      %p224 = scmp.ne.s32.totalorder %s213, %s214
      %p225 = scmp.eq.s32.totalorder %s26, 0
      %p226 = por %p224, %p225
      %p227 = scmp.ne.s32.totalorder %s213, %s214
      %p228 = scmp.eq.s32.totalorder %s27, 1
      %p229 = por %p227, %p228
      %p231 = scmp.ne.s32.totalorder %s214, %s230
      %p232 = scmp.eq.s32.totalorder %s27, 0
      %p233 = por %p231, %p232
      %p234 = scmp.le.s32.totalorder 1, %s21
      %p235 = scmp.lt.s32.totalorder %s21, 3
      %p236 = pnand %p234, %p235
      %p237 = pneg %p236
      // Predicated region
      $region9: #{tpu_custom_call.1} parent=5 // pred_check
        _
      $region10: #{tpu_custom_call.1} parent=5 // pred_check_branch
        %239 = sbr.rel (%p236) target = $region12
      $region11: #{tpu_custom_call.1} parent=5 // pred_region
        %s240 = ssub.s32 %s21, 1
        // Predicated region
        $region13: #{tpu_custom_call.1} parent=11 // pred_check
          %p241 = pneg %p80
        $region14: #{tpu_custom_call.1} parent=11 // pred_check_branch
          %243 = sbr.rel (%p241) target = $region16
        $region15: #{tpu_custom_call.1} parent=11 // pred_region
          %245 = vsyncadd [#allocation6], 0
          %s247 = sshll.u32 %s1, 4
          %s248 = int_to_ptr.hbm [resolvable:$true] %s247
          %s249 = sshll.u32 [#allocation5], 4
          %s250 = int_to_ptr.vmem [resolvable:$true] %s249
          %252 = dma.hbm_to_vmem [thread:$0]  %s248, 16, %s250, [#allocation6]
        $region16: #{tpu_custom_call.1} parent=11 // pred_fallthru
          _
        // Predicated region
        $region17: #{tpu_custom_call.1} parent=11 // pred_check
          %p253 = pneg %p101
        $region18: #{tpu_custom_call.1} parent=11 // pred_check_branch
          %255 = sbr.rel (%p253) target = $region20
        $region19: #{tpu_custom_call.1} parent=11 // pred_region
          _
        $region20: #{tpu_custom_call.1} parent=11 // pred_fallthru
          _
        // Predicated region
        $region21: #{tpu_custom_call.1} parent=11 // pred_check
          %p256 = pneg %p127
        $region22: #{tpu_custom_call.1} parent=11 // pred_check_branch
          %258 = sbr.rel (%p256) target = $region24
        $region23: #{tpu_custom_call.1} parent=11 // pred_region
          %260 = vsyncadd [#allocation6], 0
          %s261 = smul.addr %s31, 8
          %s262 = scalar_lea.hbm %s3, %s261
          %s263 = sshll.u32 %s262, 4
          %s264 = int_to_ptr.hbm [resolvable:$true] %s263
          %s265 = sshll.u32 [#allocation7], 4
          %s266 = int_to_ptr.vmem [resolvable:$true] %s265
          %271 = dma.hbm_to_vmem [thread:$0]  %s264, 2048, %s266, [#allocation6], 128, 128, 8
        $region24: #{tpu_custom_call.1} parent=11 // pred_fallthru
          _
        // Predicated region
        $region25: #{tpu_custom_call.1} parent=11 // pred_check
          %p272 = pneg %p153
        $region26: #{tpu_custom_call.1} parent=11 // pred_check_branch
          %274 = sbr.rel (%p272) target = $region28
        $region27: #{tpu_custom_call.1} parent=11 // pred_region
          %p275 = scmp.lt.s32.totalorder %s31, 0
          %s276 = scalar_select %p275, %s31, 0
          %s277 = scalar_lea.vmem %s4, %s276
        $region28: #{tpu_custom_call.1} parent=11 // pred_fallthru
          _
        // Predicated region
        $region29: #{tpu_custom_call.1} parent=11 // pred_check
          %p278 = pneg %p179
        $region30: #{tpu_custom_call.1} parent=11 // pred_check_branch
          %280 = sbr.rel (%p278) target = $region32
        $region31: #{tpu_custom_call.1} parent=11 // pred_region
          %s281 = smul.u32 16, %s31
          %283 = vsyncadd [#allocation9], 0
          %s284 = smul.addr %s281, 8
          %s285 = scalar_lea.hbm %s5, %s284
          %s286 = sshll.u32 %s285, 4
          %s287 = int_to_ptr.hbm [resolvable:$true] %s286
          %s288 = sshll.u32 [#allocation8], 4
          %s289 = int_to_ptr.vmem [resolvable:$true] %s288
          %294 = dma.hbm_to_vmem [thread:$0]  %s287, 2048, %s289, [#allocation9], 128, 128, 8
        $region32: #{tpu_custom_call.1} parent=11 // pred_fallthru
          _
        // Predicated region
        $region33: #{tpu_custom_call.1} parent=11 // pred_check
          %p295 = pneg %p200
        $region34: #{tpu_custom_call.1} parent=11 // pred_check_branch
          %297 = sbr.rel (%p295) target = $region36
        $region35: #{tpu_custom_call.1} parent=11 // pred_region
          _
        $region36: #{tpu_custom_call.1} parent=11 // pred_fallthru
          _
      $region12: #{tpu_custom_call.1} parent=5 // pred_fallthru
        _
      %p298 = scmp.lt.s32.totalorder %s21, 2
      // Predicated region
      $region37: #{tpu_custom_call.1} parent=5 // pred_check
        %p299 = pneg %p298
      $region38: #{tpu_custom_call.1} parent=5 // pred_check_branch
        %301 = sbr.rel (%p299) target = $region40
      $region39: #{tpu_custom_call.1} parent=5 // pred_region
        // Predicated region
        $region41: #{tpu_custom_call.1} parent=39 // pred_check
          %p302 = pneg %p53
        $region42: #{tpu_custom_call.1} parent=39 // pred_check_branch
          %304 = sbr.rel (%p302) target = $region44
        $region43: #{tpu_custom_call.1} parent=39 // pred_region
          %s305 = sand.u32 %s43, 1
          %s306 = scalar_lea.sflag [#allocation3], %s305
          %s307 = sand.u32 %s43, 1
          %s308 = smul.addr %s307, 8
          %s309 = scalar_lea.vmem [#allocation2], %s308
          %311 = vsyncadd %s306, 0
          %s312 = smul.addr %s28, 8
          %s313 = scalar_lea.hbm %s0, %s312
          %s315 = sshll.u32 %s313, 4
          %s316 = int_to_ptr.hbm [resolvable:$true] %s315
          %s317 = sshll.u32 %s309, 4
          %s318 = int_to_ptr.vmem [resolvable:$true] %s317
          %320 = dma.hbm_to_vmem [thread:$0]  %s316, 128, %s318, %s306
        $region44: #{tpu_custom_call.1} parent=39 // pred_fallthru
          _
      $region40: #{tpu_custom_call.1} parent=5 // pred_fallthru
        _
      %p321 = scmp.le.s32.totalorder 1, %s21
      %p322 = scmp.lt.s32.totalorder %s21, 3
      %p323 = pnand %p321, %p322
      %p324 = pneg %p323
      // Predicated region
      $region45: #{tpu_custom_call.1} parent=5 // pred_check
        _
      $region46: #{tpu_custom_call.1} parent=5 // pred_check_branch
        %326 = sbr.rel (%p323) target = $region48
      $region47: #{tpu_custom_call.1} parent=5 // pred_region
        %s327 = ssub.s32 %s21, 1
        %s328 = sand.u32 %s46, 1
        %s329 = scalar_lea.sflag [#allocation3], %s328
        %s330 = sand.u32 %s46, 1
        %s331 = smul.addr %s330, 8
        %s332 = scalar_lea.vmem [#allocation2], %s331
        // Predicated region
        $region49: #{tpu_custom_call.1} parent=47 // pred_check
          %p333 = pneg %p59
        $region50: #{tpu_custom_call.1} parent=47 // pred_check_branch
          %335 = sbr.rel (%p333) target = $region52
        $region51: #{tpu_custom_call.1} parent=47 // pred_region
          %337 = dma.done %s329, 128
        $region52: #{tpu_custom_call.1} parent=47 // pred_fallthru
          _
        // Predicated region
        $region53: #{tpu_custom_call.1} parent=47 // pred_check
          %p338 = pneg %p80
        $region54: #{tpu_custom_call.1} parent=47 // pred_check_branch
          %340 = sbr.rel (%p338) target = $region56
        $region55: #{tpu_custom_call.1} parent=47 // pred_region
          %342 = dma.done [#allocation6], 16
        $region56: #{tpu_custom_call.1} parent=47 // pred_fallthru
          _
        // Predicated region
        $region57: #{tpu_custom_call.1} parent=47 // pred_check
          %p343 = pneg %p127
        $region58: #{tpu_custom_call.1} parent=47 // pred_check_branch
          %345 = sbr.rel (%p343) target = $region60
        $region59: #{tpu_custom_call.1} parent=47 // pred_region
          %347 = dma.done [#allocation6], 2048
        $region60: #{tpu_custom_call.1} parent=47 // pred_fallthru
          _
        // Predicated region
        $region61: #{tpu_custom_call.1} parent=47 // pred_check
          %p348 = pneg %p179
        $region62: #{tpu_custom_call.1} parent=47 // pred_check_branch
          %350 = sbr.rel (%p348) target = $region64
        $region63: #{tpu_custom_call.1} parent=47 // pred_region
          %352 = dma.done [#allocation9], 2048
        $region64: #{tpu_custom_call.1} parent=47 // pred_fallthru
          _
        %s353 = sand.u32 %s46, 1
        %s354 = scalar_lea.sflag [#allocation3], %s353
        %s355 = sand.u32 %s46, 1
        %s356 = smul.addr %s355, 8
        %s357 = scalar_lea.vmem [#allocation2], %s356
        %p358 = pneg %p59
        %p359 = pneg %p56
        %p360 = pneg %p80
        %p361 = pneg %p77
        %p362 = pneg %p101
        %p363 = pneg %p98
        %p364 = pneg %p127
        %p365 = pneg %p124
        %p366 = scmp.lt.s32.totalorder %s31, 0
        %s367 = scalar_select %p366, %s31, 0
        %s368 = scalar_lea.vmem %s4, %s367
        %p369 = pneg %p153
        %p370 = pneg %p150
        %p371 = pneg %p179
        %p372 = pneg %p176
        %p373 = pneg %p200
        %p374 = pneg %p197
        %p375 = pneg %p226
        %p376 = pneg %p223
        %s377 = sand.u32 %s213, 1
        %s378 = scalar_lea.sflag [#allocation4], %s377
        %s379 = sand.u32 %s213, 1
        %s380 = smul.addr %s379, 8
        %s381 = scalar_lea.vmem [#allocation10], %s380
        %p382 = scmp.lt.s32.totalorder %s31, 0
        %s383 = scalar_select %p382, %s31, 0
        %s384 = scalar_lea.vmem %s4, %s383
        %s385 = smul.u32 16, %s31
        %v386 = vld [vmem:[%s332] sm:$0xff]
        %387 = vadd.xlane.f32.xlu0 %v386
        %v388 = vpop.xlane.xlu0 %387
        %v389 = vmul.f32 %v388, 0.03125
        %v390 = vsub.f32 %v386, %v389
        %v391 = vlaneseq
        %v392 = vand.u32 %v391, 127
        %vm393 = vcmp.lt.s32.totalorder %v392, 32
        %v394 = vsel %vm393, 1, 0
        %v395 = vcvt.s32.f32 %v394
        %v396 = vmul.f32 %v390, %v395
        %v397 = vmul.f32 %v396, %v396
        %398 = vadd.xlane.f32.xlu0 %v397
        %v399 = vpop.xlane.xlu0 %398
        %v400 = vmul.f32 %v399, 0.03125
        %v401 = vadd.f32 %v400, 1e-06
        %v402 = vrsqrt.pop %v401
        %v403 = vmul.f32 %v402, %v401
        %v404 = vmul.f32 %v403, %v402
        %v405 = vmul.f32 0.5, %v404
        %v406 = vsub.f32 1.5, %v405
        %v407 = vmul.f32 %v402, %v406
        %vm408 = vweird.f32 %v401
        %vm409 = vweird.f32 %v402
        %vm410 = vmor %vm408, %vm409
        %v411 = vsel %vm410, %v402, %v407
        %v412 = vmul.f32 %v396, %v411
        %v413 = vld [vmem:[#allocation5] sm:$0x1]
        %v415 = vperm.slane %v413, 0
        %v417 = vmul.f32 %v412, %v415
        %v418 = vld [vmem:[%s2] sm:$0x1]
        %v420 = vperm.slane %v418, 0
        %v422 = vadd.f32 %v417, %v420
        %v423 = vld [vmem:[#allocation7] sm:$0xff]
        %v424 = vld [vmem:[#allocation7 + $0x8] sm:$0xff]
        %v425 = vld [vmem:[#allocation7 + $0x10] sm:$0xff]
        %v426 = vld [vmem:[#allocation7 + $0x18] sm:$0xff]
        %v427 = vld [vmem:[#allocation7 + $0x20] sm:$0xff]
        %v428 = vld [vmem:[#allocation7 + $0x28] sm:$0xff]
        %v429 = vld [vmem:[#allocation7 + $0x30] sm:$0xff]
        %v430 = vld [vmem:[#allocation7 + $0x38] sm:$0xff]
        %v431 = vld [vmem:[#allocation7 + $0x40] sm:$0xff]
        %v432 = vld [vmem:[#allocation7 + $0x48] sm:$0xff]
        %v433 = vld [vmem:[#allocation7 + $0x50] sm:$0xff]
        %v434 = vld [vmem:[#allocation7 + $0x58] sm:$0xff]
        %v435 = vld [vmem:[#allocation7 + $0x60] sm:$0xff]
        %v436 = vld [vmem:[#allocation7 + $0x68] sm:$0xff]
        %v437 = vld [vmem:[#allocation7 + $0x70] sm:$0xff]
        %v438 = vld [vmem:[#allocation7 + $0x78] sm:$0xff]
        %v439 = vld [vmem:[%s384] sm:$0x1]
        %v441 = vperm.slane %v439, 0
        %443 = vmatpush.msra.mxu0 %v438
        %444 = vmatpush.msra.mxu0 %v437
        %445 = vmatpush.msra.mxu0 %v436
        %446 = vmatpush.msra.mxu0 %v435
        %447 = vmatpush.msra.mxu0 %v434
        %448 = vmatpush.msra.mxu0 %v433
        %449 = vmatpush.msra.mxu0 %v432
        %450 = vmatpush.msra.mxu0 %v431
        %451 = vmatpush.msra.mxu0 %v430
        %452 = vmatpush.msra.mxu0 %v429
        %453 = vmatpush.msra.mxu0 %v428
        %454 = vmatpush.msra.mxu0 %v427
        %455 = vmatpush.msra.mxu0 %v426
        %456 = vmatpush.msra.mxu0 %v425
        %457 = vmatpush.msra.mxu0 %v424
        %458 = vmatpush.msra.mxu0 %v423
        %459 = vmatmul.f32.gmra.mxu0 %v422
        %v460 = vpop.f32.mrf.mxu0
        %v461 = vadd.f32 %v441, %v460
        %462 = vdwg.mxu0
        %v463 = vmax.f32 %v461, 0.0
        %v464 = vld [vmem:[#allocation8] sm:$0xff]
        %v465 = vld [vmem:[#allocation8 + $0x8] sm:$0xff]
        %v466 = vld [vmem:[#allocation8 + $0x10] sm:$0xff]
        %v467 = vld [vmem:[#allocation8 + $0x18] sm:$0xff]
        %v468 = vld [vmem:[#allocation8 + $0x20] sm:$0xff]
        %v469 = vld [vmem:[#allocation8 + $0x28] sm:$0xff]
        %v470 = vld [vmem:[#allocation8 + $0x30] sm:$0xff]
        %v471 = vld [vmem:[#allocation8 + $0x38] sm:$0xff]
        %v472 = vld [vmem:[#allocation8 + $0x40] sm:$0xff]
        %v473 = vld [vmem:[#allocation8 + $0x48] sm:$0xff]
        %v474 = vld [vmem:[#allocation8 + $0x50] sm:$0xff]
        %v475 = vld [vmem:[#allocation8 + $0x58] sm:$0xff]
        %v476 = vld [vmem:[#allocation8 + $0x60] sm:$0xff]
        %v477 = vld [vmem:[#allocation8 + $0x68] sm:$0xff]
        %v478 = vld [vmem:[#allocation8 + $0x70] sm:$0xff]
        %v479 = vld [vmem:[#allocation8 + $0x78] sm:$0xff]
        %v480 = vld [vmem:[%s6] sm:$0x1]
        %v482 = vperm.slane %v480, 0
        %484 = vmatpush.msra.mxu0 %v479
        %485 = vmatpush.msra.mxu0 %v478
        %486 = vmatpush.msra.mxu0 %v477
        %487 = vmatpush.msra.mxu0 %v476
        %488 = vmatpush.msra.mxu0 %v475
        %489 = vmatpush.msra.mxu0 %v474
        %490 = vmatpush.msra.mxu0 %v473
        %491 = vmatpush.msra.mxu0 %v472
        %492 = vmatpush.msra.mxu0 %v471
        %493 = vmatpush.msra.mxu0 %v470
        %494 = vmatpush.msra.mxu0 %v469
        %495 = vmatpush.msra.mxu0 %v468
        %496 = vmatpush.msra.mxu0 %v467
        %497 = vmatpush.msra.mxu0 %v466
        %498 = vmatpush.msra.mxu0 %v465
        %499 = vmatpush.msra.mxu0 %v464
        %500 = vmatmul.f32.gmra.mxu0 %v463
        %v501 = vpop.f32.mrf.mxu0
        %v502 = vadd.f32 %v482, %v501
        %503 = vdwg.mxu0
        %v504 = vadd.f32 %v502, %v386
        %505 = vst [vmem:[%s381] sm:$0xff] %v504
        %s506 = sand.u32 %s213, 1
        %s507 = scalar_lea.sflag [#allocation4], %s506
        %s508 = sand.u32 %s213, 1
        %s509 = smul.addr %s508, 8
        %s510 = scalar_lea.vmem [#allocation10], %s509
        // Predicated region
        $region65: #{tpu_custom_call.1} parent=47 // pred_check
          %p511 = pneg %p223
        $region66: #{tpu_custom_call.1} parent=47 // pred_check_branch
          %513 = sbr.rel (%p511) target = $region68
        $region67: #{tpu_custom_call.1} parent=47 // pred_region
          %515 = vsyncadd %s507, 0
          %s516 = smul.addr %s30, 8
          %s517 = scalar_lea.hbm %s7, %s516
          %s519 = sshll.u32 %s510, 4
          %s520 = int_to_ptr.vmem [resolvable:$true] %s519
          %s521 = sshll.u32 %s517, 4
          %s522 = int_to_ptr.hbm [resolvable:$true] %s521
          %524 = dma.vmem_to_hbm [thread:$0]  %s520, 128, %s522, %s507
        $region68: #{tpu_custom_call.1} parent=47 // pred_fallthru
          _
      $region48: #{tpu_custom_call.1} parent=5 // pred_fallthru
        _
      %p525 = scmp.le.s32.totalorder 2, %s21
      // Predicated region
      $region69: #{tpu_custom_call.1} parent=5 // pred_check
        %p526 = pneg %p525
      $region70: #{tpu_custom_call.1} parent=5 // pred_check_branch
        %528 = sbr.rel (%p526) target = $region72
      $region71: #{tpu_custom_call.1} parent=5 // pred_region
        %s529 = ssub.s32 %s21, 2
        // Predicated region
        $region73: #{tpu_custom_call.1} parent=71 // pred_check
          %p530 = pneg %p229
        $region74: #{tpu_custom_call.1} parent=71 // pred_check_branch
          %532 = sbr.rel (%p530) target = $region76
        $region75: #{tpu_custom_call.1} parent=71 // pred_region
          %s533 = sand.u32 %s214, 1
          %s534 = scalar_lea.sflag [#allocation4], %s533
          %s535 = sand.u32 %s214, 1
          %s536 = smul.addr %s535, 8
          %s537 = scalar_lea.vmem [#allocation10], %s536
          %539 = dma.done %s534, 128
        $region76: #{tpu_custom_call.1} parent=71 // pred_fallthru
          _
      $region72: #{tpu_custom_call.1} parent=5 // pred_fallthru
        _
    $region6: #{tpu_custom_call.1} parent=1 // loop_footer
      %s25 = sadd.s32 1, %s21
    $region7: #{tpu_custom_call.1} parent=1 // loop_footer_branch
      %20 = sbr.rel target = $region3
    $region8: #{tpu_custom_call.1} parent=1 // loop_exit
      _
    %540 = vsyncpa [#allocation3], 1
    %s541 = scalar_lea.sflag [#allocation3], 1
    %542 = vsyncpa %s541, 1
    %543 = vsyncpa [#allocation6], 1
    %544 = vsyncpa [#allocation9], 1
    %545 = vsyncpa [#allocation4], 1
    %s546 = scalar_lea.sflag [#allocation4], 1
    %547 = vsyncpa %s546, 1

// kernel: tpu_custom_call.1
$region0: #{tpu_custom_call.1}
  #allocation0 [shape = 'u32[]', space=smem, size = 0x4, offset = 0x4, fixed_abs, tag = 'smem constant byte address 0x4 - core index']
  #allocation1 [shape = 'u32[72,128]{1,0:T(1,128)}', space=vmem, size = 0x9000, scoped, tag = 'internal scratch']
  %s0 = inlined_call_operand.hbm [shape: f32[16,128], index: 0, kind: input, shape index: {}]
  %s1 = inlined_call_operand.hbm [shape: f32[1,128], index: 1, kind: input, shape index: {}]
  %s2 = inlined_call_operand.vmem [shape: f32[1,128], index: 2, kind: input, shape index: {}]
  %s3 = inlined_call_operand.hbm [shape: f32[128,128], index: 3, kind: input, shape index: {}]
  %s4 = inlined_call_operand.vmem [shape: f32[1,128], index: 4, kind: input, shape index: {}]
  %s5 = inlined_call_operand.hbm [shape: f32[128,128], index: 5, kind: input, shape index: {}]
  %s6 = inlined_call_operand.vmem [shape: f32[1,128], index: 6, kind: input, shape index: {}]
  %s7 = inlined_call_operand.hbm [shape: f32[16,128], index: 7, kind: output, shape index: {}]
  %s8 = sld [smem:[#allocation0]]
  $region77: #{tpu_custom_call.1} parent=0
    _
  %s10 = ssub.s32 1, %s8
  %s11 = scalar_select 0, %s10, %s8
  $region1: #{tpu_custom_call.1} parent=0
    #allocation2 [shape = 'u8[8192]{0}', space=vmem, size = 0x2000, scoped, tag = 'input window, operand 0']
    #allocation3 [shape = 's32[2]{0}', space=sflag, size = 0x8, scoped, tag = 'scoped memory for tpu_custom_call.1']
    #allocation4 [shape = 's32[2]{0}', space=sflag, size = 0x8, scoped, tag = 'scoped memory for tpu_custom_call.1']
    #allocation5 [shape = 'u8[512]{0}', space=vmem, size = 0x400, scoped, tag = 'input window, operand 1, single buffered']
    #allocation6 [shape = 's32[1]{0}', space=sflag, size = 0x4, scoped, tag = 'scoped memory for tpu_custom_call.1']
    #allocation7 [shape = 'u8[65536]{0}', space=vmem, size = 0x10000, scoped, tag = 'input window, operand 3, single buffered']
    #allocation8 [shape = 'u8[65536]{0}', space=vmem, size = 0x10000, scoped, tag = 'input window, operand 5, single buffered']
    #allocation9 [shape = 's32[1]{0}', space=sflag, size = 0x4, scoped, tag = 'scoped memory for tpu_custom_call.1']
    #allocation10 [shape = 'u8[8192]{0}', space=vmem, size = 0x2000, scoped, tag = 'output window, operand 0']
    %12 = vsyncpa [#allocation3], 0
    %s13 = scalar_lea.sflag [#allocation3], 1
    %14 = vsyncpa %s13, 0
    %15 = vsyncpa [#allocation6], 0
    %16 = vsyncpa [#allocation9], 0
    %17 = vsyncpa [#allocation4], 0
    %s18 = scalar_lea.sflag [#allocation4], 1
    %19 = vsyncpa %s18, 0
    loop: start=0, step=1, limit=4
    $region2: #{tpu_custom_call.1} parent=1 // loop_pre_header
      _
    $region3: #{tpu_custom_call.1} parent=1 // loop_header
      %s21 = sphi 0, %s25
      %p22 = scmp.ge.s32.totalorder %s21, 4
      %s28 = sphi 0, %s40
      %s29 = sphi 0, %s36
      %s30 = sphi 0, %s28
      %s31 = sphi 0, %s29
      %s32 = sphi 0, %s30
      %s33 = sphi 0, %s31
      %s43 = sphi 0, %s45
      %s46 = sphi 0, %s43
      %s47 = sphi 0, %s46
      %s63 = sphi 0, %s47
      %s67 = sphi 0, %s67
      %s69 = sphi 0, %s67
      %s70 = sphi 0, %s69
      %s84 = sphi 0, %s70
      %s88 = sphi 0, %s88
      %s90 = sphi 0, %s88
      %s91 = sphi 0, %s90
      %s105 = sphi 0, %s91
      %s111 = sphi 0, %s113
      %s114 = sphi 0, %s111
      %s115 = sphi 0, %s114
      %s131 = sphi 0, %s115
      %s137 = sphi 0, %s139
      %s140 = sphi 0, %s137
      %s141 = sphi 0, %s140
      %s157 = sphi 0, %s141
      %s163 = sphi 0, %s165
      %s166 = sphi 0, %s163
      %s167 = sphi 0, %s166
      %s183 = sphi 0, %s167
      %s187 = sphi 0, %s187
      %s189 = sphi 0, %s187
      %s190 = sphi 0, %s189
      %s204 = sphi 0, %s190
      %s210 = sphi 0, %s212
      %s213 = sphi 0, %s210
      %s214 = sphi 0, %s213
      %s230 = sphi 0, %s214
    $region4: #{tpu_custom_call.1} parent=1 // loop_header_branch
      %24 = sbr.rel (%p22) target = $region8
    $region5: #{tpu_custom_call.1} parent=1 // loop_body
      %s26 = ssub.s32 %s21, 1
      %s27 = ssub.s32 %s21, 2
      %s34 = sadd.s32 1, %s29
      %p35 = scmp.ge.s32.totalorder %s34, 1
      %s36 = scalar_select %p35, 0, %s34
      %s37 = sadd.s32 1, %s28
      %s38 = scalar_select %p35, %s37, %s28
      %p39 = scmp.ge.s32.totalorder %s38, 2
      %s40 = scalar_select %p39, 0, %s38
      %s41 = ssub.s32 %s28, %s40
      %p42 = scmp.eq.s32.totalorder %s41, 0
      %s44 = sadd.s32 %s43, 1
      %s45 = scalar_select %p42, %s43, %s44
      %p48 = pneg %p42
      %p49 = scmp.eq.s32.totalorder %s21, 1
      %p50 = por %p48, %p49
      %p51 = scmp.ne.s32.totalorder %s43, %s46
      %p52 = scmp.eq.s32.totalorder %s21, 0
      %p53 = por %p51, %p52
      %p54 = scmp.ne.s32.totalorder %s43, %s46
      %p55 = scmp.eq.s32.totalorder %s26, 1
      %p56 = por %p54, %p55
      %p57 = scmp.ne.s32.totalorder %s46, %s47
      %p58 = scmp.eq.s32.totalorder %s26, 0
      %p59 = por %p57, %p58
      %p60 = scmp.ne.s32.totalorder %s46, %s47
      %p61 = scmp.eq.s32.totalorder %s27, 1
      %p62 = por %p60, %p61
      %p64 = scmp.ne.s32.totalorder %s47, %s63
      %p65 = scmp.eq.s32.totalorder %s27, 0
      %p66 = por %p64, %p65
      %s68 = sadd.s32 %s67, 1
      %p71 = scmp.eq.s32.totalorder %s21, 1
      %p72 = scmp.ne.s32.totalorder %s67, %s69
      %p73 = scmp.eq.s32.totalorder %s21, 0
      %p74 = por %p72, %p73
      %p75 = scmp.ne.s32.totalorder %s67, %s69
      %p76 = scmp.eq.s32.totalorder %s26, 1
      %p77 = por %p75, %p76
      %p78 = scmp.ne.s32.totalorder %s69, %s70
      %p79 = scmp.eq.s32.totalorder %s26, 0
      %p80 = por %p78, %p79
      %p81 = scmp.ne.s32.totalorder %s69, %s70
      %p82 = scmp.eq.s32.totalorder %s27, 1
      %p83 = por %p81, %p82
      %p85 = scmp.ne.s32.totalorder %s70, %s84
      %p86 = scmp.eq.s32.totalorder %s27, 0
      %p87 = por %p85, %p86
      %s89 = sadd.s32 %s88, 1
      %p92 = scmp.eq.s32.totalorder %s21, 1
      %p93 = scmp.ne.s32.totalorder %s88, %s90
      %p94 = scmp.eq.s32.totalorder %s21, 0
      %p95 = por %p93, %p94
      %p96 = scmp.ne.s32.totalorder %s88, %s90
      %p97 = scmp.eq.s32.totalorder %s26, 1
      %p98 = por %p96, %p97
      %p99 = scmp.ne.s32.totalorder %s90, %s91
      %p100 = scmp.eq.s32.totalorder %s26, 0
      %p101 = por %p99, %p100
      %p102 = scmp.ne.s32.totalorder %s90, %s91
      %p103 = scmp.eq.s32.totalorder %s27, 1
      %p104 = por %p102, %p103
      %p106 = scmp.ne.s32.totalorder %s91, %s105
      %p107 = scmp.eq.s32.totalorder %s27, 0
      %p108 = por %p106, %p107
      %s109 = ssub.s32 %s29, %s36
      %p110 = scmp.eq.s32.totalorder %s109, 0
      %s112 = sadd.s32 %s111, 1
      %s113 = scalar_select %p110, %s111, %s112
      %p116 = pneg %p110
      %p117 = scmp.eq.s32.totalorder %s21, 1
      %p118 = por %p116, %p117
      %p119 = scmp.ne.s32.totalorder %s111, %s114
      %p120 = scmp.eq.s32.totalorder %s21, 0
      %p121 = por %p119, %p120
      %p122 = scmp.ne.s32.totalorder %s111, %s114
      %p123 = scmp.eq.s32.totalorder %s26, 1
      %p124 = por %p122, %p123
      %p125 = scmp.ne.s32.totalorder %s114, %s115
      %p126 = scmp.eq.s32.totalorder %s26, 0
      %p127 = por %p125, %p126
      %p128 = scmp.ne.s32.totalorder %s114, %s115
      %p129 = scmp.eq.s32.totalorder %s27, 1
      %p130 = por %p128, %p129
      %p132 = scmp.ne.s32.totalorder %s115, %s131
      %p133 = scmp.eq.s32.totalorder %s27, 0
      %p134 = por %p132, %p133
      %s135 = ssub.s32 %s29, %s36
      %p136 = scmp.eq.s32.totalorder %s135, 0
      %s138 = sadd.s32 %s137, 1
      %s139 = scalar_select %p136, %s137, %s138
      %p142 = pneg %p136
      %p143 = scmp.eq.s32.totalorder %s21, 1
      %p144 = por %p142, %p143
      %p145 = scmp.ne.s32.totalorder %s137, %s140
      %p146 = scmp.eq.s32.totalorder %s21, 0
      %p147 = por %p145, %p146
      %p148 = scmp.ne.s32.totalorder %s137, %s140
      %p149 = scmp.eq.s32.totalorder %s26, 1
      %p150 = por %p148, %p149
      %p151 = scmp.ne.s32.totalorder %s140, %s141
      %p152 = scmp.eq.s32.totalorder %s26, 0
      %p153 = por %p151, %p152
      %p154 = scmp.ne.s32.totalorder %s140, %s141
      %p155 = scmp.eq.s32.totalorder %s27, 1
      %p156 = por %p154, %p155
      %p158 = scmp.ne.s32.totalorder %s141, %s157
      %p159 = scmp.eq.s32.totalorder %s27, 0
      %p160 = por %p158, %p159
      %s161 = ssub.s32 %s29, %s36
      %p162 = scmp.eq.s32.totalorder %s161, 0
      %s164 = sadd.s32 %s163, 1
      %s165 = scalar_select %p162, %s163, %s164
      %p168 = pneg %p162
      %p169 = scmp.eq.s32.totalorder %s21, 1
      %p170 = por %p168, %p169
      %p171 = scmp.ne.s32.totalorder %s163, %s166
      %p172 = scmp.eq.s32.totalorder %s21, 0
      %p173 = por %p171, %p172
      %p174 = scmp.ne.s32.totalorder %s163, %s166
      %p175 = scmp.eq.s32.totalorder %s26, 1
      %p176 = por %p174, %p175
      %p177 = scmp.ne.s32.totalorder %s166, %s167
      %p178 = scmp.eq.s32.totalorder %s26, 0
      %p179 = por %p177, %p178
      %p180 = scmp.ne.s32.totalorder %s166, %s167
      %p181 = scmp.eq.s32.totalorder %s27, 1
      %p182 = por %p180, %p181
      %p184 = scmp.ne.s32.totalorder %s167, %s183
      %p185 = scmp.eq.s32.totalorder %s27, 0
      %p186 = por %p184, %p185
      %s188 = sadd.s32 %s187, 1
      %p191 = scmp.eq.s32.totalorder %s21, 1
      %p192 = scmp.ne.s32.totalorder %s187, %s189
      %p193 = scmp.eq.s32.totalorder %s21, 0
      %p194 = por %p192, %p193
      %p195 = scmp.ne.s32.totalorder %s187, %s189
      %p196 = scmp.eq.s32.totalorder %s26, 1
      %p197 = por %p195, %p196
      %p198 = scmp.ne.s32.totalorder %s189, %s190
      %p199 = scmp.eq.s32.totalorder %s26, 0
      %p200 = por %p198, %p199
      %p201 = scmp.ne.s32.totalorder %s189, %s190
      %p202 = scmp.eq.s32.totalorder %s27, 1
      %p203 = por %p201, %p202
      %p205 = scmp.ne.s32.totalorder %s190, %s204
      %p206 = scmp.eq.s32.totalorder %s27, 0
      %p207 = por %p205, %p206
      %s208 = ssub.s32 %s28, %s40
      %p209 = scmp.eq.s32.totalorder %s208, 0
      %s211 = sadd.s32 %s210, 1
      %s212 = scalar_select %p209, %s210, %s211
      %p215 = pneg %p209
      %p216 = scmp.eq.s32.totalorder %s21, 1
      %p217 = por %p215, %p216
      %p218 = scmp.ne.s32.totalorder %s210, %s213
      %p219 = scmp.eq.s32.totalorder %s21, 0
      %p220 = por %p218, %p219
      %p221 = scmp.ne.s32.totalorder %s210, %s213
      %p222 = scmp.eq.s32.totalorder %s26, 1
      %p223 = por %p221, %p222
      %p224 = scmp.ne.s32.totalorder %s213, %s214
      %p225 = scmp.eq.s32.totalorder %s26, 0
      %p226 = por %p224, %p225
      %p227 = scmp.ne.s32.totalorder %s213, %s214
      %p228 = scmp.eq.s32.totalorder %s27, 1
      %p229 = por %p227, %p228
      %p231 = scmp.ne.s32.totalorder %s214, %s230
      %p232 = scmp.eq.s32.totalorder %s27, 0
      %p233 = por %p231, %p232
      %p234 = scmp.le.s32.totalorder 1, %s21
      %p235 = scmp.lt.s32.totalorder %s21, 3
      %p236 = pnand %p234, %p235
      %p237 = pneg %p236
      // Predicated region
      $region9: #{tpu_custom_call.1} parent=5 // pred_check
        _
      $region10: #{tpu_custom_call.1} parent=5 // pred_check_branch
        %239 = sbr.rel (%p236) target = $region12
      $region11: #{tpu_custom_call.1} parent=5 // pred_region
        %s240 = ssub.s32 %s21, 1
        // Predicated region
        $region13: #{tpu_custom_call.1} parent=11 // pred_check
          %p241 = pneg %p80
        $region14: #{tpu_custom_call.1} parent=11 // pred_check_branch
          %243 = sbr.rel (%p241) target = $region16
        $region15: #{tpu_custom_call.1} parent=11 // pred_region
          %245 = vsyncadd [#allocation6], 0
          %s247 = sshll.u32 %s1, 4
          %s248 = int_to_ptr.hbm [resolvable:$true] %s247
          %s249 = sshll.u32 [#allocation5], 4
          %s250 = int_to_ptr.vmem [resolvable:$true] %s249
          %252 = dma.hbm_to_vmem [thread:$0]  %s248, 16, %s250, [#allocation6]
        $region16: #{tpu_custom_call.1} parent=11 // pred_fallthru
          _
        // Predicated region
        $region17: #{tpu_custom_call.1} parent=11 // pred_check
          %p253 = pneg %p101
        $region18: #{tpu_custom_call.1} parent=11 // pred_check_branch
          %255 = sbr.rel (%p253) target = $region20
        $region19: #{tpu_custom_call.1} parent=11 // pred_region
          _
        $region20: #{tpu_custom_call.1} parent=11 // pred_fallthru
          _
        // Predicated region
        $region21: #{tpu_custom_call.1} parent=11 // pred_check
          %p256 = pneg %p127
        $region22: #{tpu_custom_call.1} parent=11 // pred_check_branch
          %258 = sbr.rel (%p256) target = $region24
        $region23: #{tpu_custom_call.1} parent=11 // pred_region
          %260 = vsyncadd [#allocation6], 0
          %s261 = smul.addr %s31, 8
          %s262 = scalar_lea.hbm %s3, %s261
          %s263 = sshll.u32 %s262, 4
          %s264 = int_to_ptr.hbm [resolvable:$true] %s263
          %s265 = sshll.u32 [#allocation7], 4
          %s266 = int_to_ptr.vmem [resolvable:$true] %s265
          %271 = dma.hbm_to_vmem [thread:$0]  %s264, 2048, %s266, [#allocation6], 128, 128, 8
        $region24: #{tpu_custom_call.1} parent=11 // pred_fallthru
          _
        // Predicated region
        $region25: #{tpu_custom_call.1} parent=11 // pred_check
          %p272 = pneg %p153
        $region26: #{tpu_custom_call.1} parent=11 // pred_check_branch
          %274 = sbr.rel (%p272) target = $region28
        $region27: #{tpu_custom_call.1} parent=11 // pred_region
          %p275 = scmp.lt.s32.totalorder %s31, 0
          %s276 = scalar_select %p275, %s31, 0
          %s277 = scalar_lea.vmem %s4, %s276
        $region28: #{tpu_custom_call.1} parent=11 // pred_fallthru
          _
        // Predicated region
        $region29: #{tpu_custom_call.1} parent=11 // pred_check
          %p278 = pneg %p179
        $region30: #{tpu_custom_call.1} parent=11 // pred_check_branch
          %280 = sbr.rel (%p278) target = $region32
        $region31: #{tpu_custom_call.1} parent=11 // pred_region
          %s281 = smul.u32 16, %s31
          %283 = vsyncadd [#allocation9], 0
          %s284 = smul.addr %s281, 8
          %s285 = scalar_lea.hbm %s5, %s284
          %s286 = sshll.u32 %s285, 4
          %s287 = int_to_ptr.hbm [resolvable:$true] %s286
          %s288 = sshll.u32 [#allocation8], 4
          %s289 = int_to_ptr.vmem [resolvable:$true] %s288
          %294 = dma.hbm_to_vmem [thread:$0]  %s287, 2048, %s289, [#allocation9], 128, 128, 8
        $region32: #{tpu_custom_call.1} parent=11 // pred_fallthru
          _
        // Predicated region
        $region33: #{tpu_custom_call.1} parent=11 // pred_check
          %p295 = pneg %p200
        $region34: #{tpu_custom_call.1} parent=11 // pred_check_branch
          %297 = sbr.rel (%p295) target = $region36
        $region35: #{tpu_custom_call.1} parent=11 // pred_region
          _
        $region36: #{tpu_custom_call.1} parent=11 // pred_fallthru
          _
      $region12: #{tpu_custom_call.1} parent=5 // pred_fallthru
        _
      %p298 = scmp.lt.s32.totalorder %s21, 2
      // Predicated region
      $region37: #{tpu_custom_call.1} parent=5 // pred_check
        %p299 = pneg %p298
      $region38: #{tpu_custom_call.1} parent=5 // pred_check_branch
        %301 = sbr.rel (%p299) target = $region40
      $region39: #{tpu_custom_call.1} parent=5 // pred_region
        // Predicated region
        $region41: #{tpu_custom_call.1} parent=39 // pred_check
          %p302 = pneg %p53
        $region42: #{tpu_custom_call.1} parent=39 // pred_check_branch
          %304 = sbr.rel (%p302) target = $region44
        $region43: #{tpu_custom_call.1} parent=39 // pred_region
          %s305 = sand.u32 %s43, 1
          %s306 = scalar_lea.sflag [#allocation3], %s305
          %s307 = sand.u32 %s43, 1
          %s308 = smul.addr %s307, 8
          %s309 = scalar_lea.vmem [#allocation2], %s308
          %311 = vsyncadd %s306, 0
          %s312 = smul.addr %s28, 8
          %s313 = scalar_lea.hbm %s0, %s312
          %s315 = sshll.u32 %s313, 4
          %s316 = int_to_ptr.hbm [resolvable:$true] %s315
          %s317 = sshll.u32 %s309, 4
          %s318 = int_to_ptr.vmem [resolvable:$true] %s317
          %320 = dma.hbm_to_vmem [thread:$0]  %s316, 128, %s318, %s306
        $region44: #{tpu_custom_call.1} parent=39 // pred_fallthru
          _
      $region40: #{tpu_custom_call.1} parent=5 // pred_fallthru
        _
      %p321 = scmp.le.s32.totalorder 1, %s21
      %p322 = scmp.lt.s32.totalorder %s21, 3
      %p323 = pnand %p321, %p322
      %p324 = pneg %p323
      // Predicated region
      $region45: #{tpu_custom_call.1} parent=5 // pred_check
        _
      $region46: #{tpu_custom_call.1} parent=5 // pred_check_branch
        %326 = sbr.rel (%p323) target = $region48
      $region47: #{tpu_custom_call.1} parent=5 // pred_region
        %s327 = ssub.s32 %s21, 1
        %s328 = sand.u32 %s46, 1
        %s329 = scalar_lea.sflag [#allocation3], %s328
        %s330 = sand.u32 %s46, 1
        %s331 = smul.addr %s330, 8
        %s332 = scalar_lea.vmem [#allocation2], %s331
        // Predicated region
        $region49: #{tpu_custom_call.1} parent=47 // pred_check
          %p333 = pneg %p59
        $region50: #{tpu_custom_call.1} parent=47 // pred_check_branch
          %335 = sbr.rel (%p333) target = $region52
        $region51: #{tpu_custom_call.1} parent=47 // pred_region
          %337 = dma.done %s329, 128
        $region52: #{tpu_custom_call.1} parent=47 // pred_fallthru
          _
        // Predicated region
        $region53: #{tpu_custom_call.1} parent=47 // pred_check
          %p338 = pneg %p80
        $region54: #{tpu_custom_call.1} parent=47 // pred_check_branch
          %340 = sbr.rel (%p338) target = $region56
        $region55: #{tpu_custom_call.1} parent=47 // pred_region
          %342 = dma.done [#allocation6], 16
        $region56: #{tpu_custom_call.1} parent=47 // pred_fallthru
          _
        // Predicated region
        $region57: #{tpu_custom_call.1} parent=47 // pred_check
          %p343 = pneg %p127
        $region58: #{tpu_custom_call.1} parent=47 // pred_check_branch
          %345 = sbr.rel (%p343) target = $region60
        $region59: #{tpu_custom_call.1} parent=47 // pred_region
          %347 = dma.done [#allocation6], 2048
        $region60: #{tpu_custom_call.1} parent=47 // pred_fallthru
          _
        // Predicated region
        $region61: #{tpu_custom_call.1} parent=47 // pred_check
          %p348 = pneg %p179
        $region62: #{tpu_custom_call.1} parent=47 // pred_check_branch
          %350 = sbr.rel (%p348) target = $region64
        $region63: #{tpu_custom_call.1} parent=47 // pred_region
          %352 = dma.done [#allocation9], 2048
        $region64: #{tpu_custom_call.1} parent=47 // pred_fallthru
          _
        %s353 = sand.u32 %s46, 1
        %s354 = scalar_lea.sflag [#allocation3], %s353
        %s355 = sand.u32 %s46, 1
        %s356 = smul.addr %s355, 8
        %s357 = scalar_lea.vmem [#allocation2], %s356
        %p358 = pneg %p59
        %p359 = pneg %p56
        %p360 = pneg %p80
        %p361 = pneg %p77
        %p362 = pneg %p101
        %p363 = pneg %p98
        %p364 = pneg %p127
        %p365 = pneg %p124
        %p366 = scmp.lt.s32.totalorder %s31, 0
        %s367 = scalar_select %p366, %s31, 0
        %s368 = scalar_lea.vmem %s4, %s367
        %p369 = pneg %p153
        %p370 = pneg %p150
        %p371 = pneg %p179
        %p372 = pneg %p176
        %p373 = pneg %p200
        %p374 = pneg %p197
        %p375 = pneg %p226
        %p376 = pneg %p223
        %s377 = sand.u32 %s213, 1
        %s378 = scalar_lea.sflag [#allocation4], %s377
        %s379 = sand.u32 %s213, 1
        %s380 = smul.addr %s379, 8
        %s381 = scalar_lea.vmem [#allocation10], %s380
        %p382 = scmp.lt.s32.totalorder %s31, 0
        %s383 = scalar_select %p382, %s31, 0
        %s384 = scalar_lea.vmem %s4, %s383
        %s385 = smul.u32 16, %s31
        %v386 = vld [vmem:[%s332] sm:$0xff]
        %387 = vadd.xlane.f32.xlu0 %v386
        %v388 = vpop.xlane.xlu0 %387
        %v389 = vmul.f32 %v388, 0.03125
        %v390 = vsub.f32 %v386, %v389
        %v391 = vlaneseq
        %v392 = vand.u32 %v391, 127
        %vm393 = vcmp.lt.s32.totalorder %v392, 32
        %v394 = vsel %vm393, 1, 0
        %v395 = vcvt.s32.f32 %v394
        %v396 = vmul.f32 %v390, %v395
        %v397 = vmul.f32 %v396, %v396
        %398 = vadd.xlane.f32.xlu0 %v397
        %v399 = vpop.xlane.xlu0 %398
        %v400 = vmul.f32 %v399, 0.03125
        %v401 = vadd.f32 %v400, 1e-06
        %v402 = vrsqrt.pop %v401
        %v403 = vmul.f32 %v402, %v401
        %v404 = vmul.f32 %v403, %v402
        %v405 = vmul.f32 0.5, %v404
        %v406 = vsub.f32 1.5, %v405
        %v407 = vmul.f32 %v402, %v406
        %vm408 = vweird.f32 %v401
        %vm409 = vweird.f32 %v402
        %vm410 = vmor %vm408, %vm409
        %v411 = vsel %vm410, %v402, %v407
        %v412 = vmul.f32 %v396, %v411
        %v413 = vld [vmem:[#allocation5] sm:$0x1]
        %v415 = vperm.slane %v413, 0
        %v417 = vmul.f32 %v412, %v415
        %v418 = vld [vmem:[%s2] sm:$0x1]
        %v420 = vperm.slane %v418, 0
        %v422 = vadd.f32 %v417, %v420
        %v423 = vld [vmem:[#allocation7] sm:$0xff]
        %v424 = vld [vmem:[#allocation7 + $0x8] sm:$0xff]
        %v425 = vld [vmem:[#allocation7 + $0x10] sm:$0xff]
        %v426 = vld [vmem:[#allocation7 + $0x18] sm:$0xff]
        %v427 = vld [vmem:[#allocation7 + $0x20] sm:$0xff]
        %v428 = vld [vmem:[#allocation7 + $0x28] sm:$0xff]
        %v429 = vld [vmem:[#allocation7 + $0x30] sm:$0xff]
        %v430 = vld [vmem:[#allocation7 + $0x38] sm:$0xff]
        %v431 = vld [vmem:[#allocation7 + $0x40] sm:$0xff]
        %v432 = vld [vmem:[#allocation7 + $0x48] sm:$0xff]
        %v433 = vld [vmem:[#allocation7 + $0x50] sm:$0xff]
        %v434 = vld [vmem:[#allocation7 + $0x58] sm:$0xff]
        %v435 = vld [vmem:[#allocation7 + $0x60] sm:$0xff]
        %v436 = vld [vmem:[#allocation7 + $0x68] sm:$0xff]
        %v437 = vld [vmem:[#allocation7 + $0x70] sm:$0xff]
        %v438 = vld [vmem:[#allocation7 + $0x78] sm:$0xff]
        %v439 = vld [vmem:[%s384] sm:$0x1]
        %v441 = vperm.slane %v439, 0
        %443 = vmatpush.msra.mxu0 %v438
        %444 = vmatpush.msra.mxu0 %v437
        %445 = vmatpush.msra.mxu0 %v436
        %446 = vmatpush.msra.mxu0 %v435
        %447 = vmatpush.msra.mxu0 %v434
        %448 = vmatpush.msra.mxu0 %v433
        %449 = vmatpush.msra.mxu0 %v432
        %450 = vmatpush.msra.mxu0 %v431
        %451 = vmatpush.msra.mxu0 %v430
        %452 = vmatpush.msra.mxu0 %v429
        %453 = vmatpush.msra.mxu0 %v428
        %454 = vmatpush.msra.mxu0 %v427
        %455 = vmatpush.msra.mxu0 %v426
        %456 = vmatpush.msra.mxu0 %v425
        %457 = vmatpush.msra.mxu0 %v424
        %458 = vmatpush.msra.mxu0 %v423
        %459 = vmatmul.f32.gmra.mxu0 %v422
        %v460 = vpop.f32.mrf.mxu0
        %v461 = vadd.f32 %v441, %v460
        %462 = vdwg.mxu0
        %v463 = vmax.f32 %v461, 0.0
        %v464 = vld [vmem:[#allocation8] sm:$0xff]
        %v465 = vld [vmem:[#allocation8 + $0x8] sm:$0xff]
        %v466 = vld [vmem:[#allocation8 + $0x10] sm:$0xff]
        %v467 = vld [vmem:[#allocation8 + $0x18] sm:$0xff]
        %v468 = vld [vmem:[#allocation8 + $0x20] sm:$0xff]
        %v469 = vld [vmem:[#allocation8 + $0x28] sm:$0xff]
        %v470 = vld [vmem:[#allocation8 + $0x30] sm:$0xff]
        %v471 = vld [vmem:[#allocation8 + $0x38] sm:$0xff]
        %v472 = vld [vmem:[#allocation8 + $0x40] sm:$0xff]
        %v473 = vld [vmem:[#allocation8 + $0x48] sm:$0xff]
        %v474 = vld [vmem:[#allocation8 + $0x50] sm:$0xff]
        %v475 = vld [vmem:[#allocation8 + $0x58] sm:$0xff]
        %v476 = vld [vmem:[#allocation8 + $0x60] sm:$0xff]
        %v477 = vld [vmem:[#allocation8 + $0x68] sm:$0xff]
        %v478 = vld [vmem:[#allocation8 + $0x70] sm:$0xff]
        %v479 = vld [vmem:[#allocation8 + $0x78] sm:$0xff]
        %v480 = vld [vmem:[%s6] sm:$0x1]
        %v482 = vperm.slane %v480, 0
        %484 = vmatpush.msra.mxu0 %v479
        %485 = vmatpush.msra.mxu0 %v478
        %486 = vmatpush.msra.mxu0 %v477
        %487 = vmatpush.msra.mxu0 %v476
        %488 = vmatpush.msra.mxu0 %v475
        %489 = vmatpush.msra.mxu0 %v474
        %490 = vmatpush.msra.mxu0 %v473
        %491 = vmatpush.msra.mxu0 %v472
        %492 = vmatpush.msra.mxu0 %v471
        %493 = vmatpush.msra.mxu0 %v470
        %494 = vmatpush.msra.mxu0 %v469
        %495 = vmatpush.msra.mxu0 %v468
        %496 = vmatpush.msra.mxu0 %v467
        %497 = vmatpush.msra.mxu0 %v466
        %498 = vmatpush.msra.mxu0 %v465
        %499 = vmatpush.msra.mxu0 %v464
        %500 = vmatmul.f32.gmra.mxu0 %v463
        %v501 = vpop.f32.mrf.mxu0
        %v502 = vadd.f32 %v482, %v501
        %503 = vdwg.mxu0
        %v504 = vadd.f32 %v502, %v386
        %505 = vst [vmem:[%s381] sm:$0xff] %v504
        %s506 = sand.u32 %s213, 1
        %s507 = scalar_lea.sflag [#allocation4], %s506
        %s508 = sand.u32 %s213, 1
        %s509 = smul.addr %s508, 8
        %s510 = scalar_lea.vmem [#allocation10], %s509
        // Predicated region
        $region65: #{tpu_custom_call.1} parent=47 // pred_check
          %p511 = pneg %p223
        $region66: #{tpu_custom_call.1} parent=47 // pred_check_branch
          %513 = sbr.rel (%p511) target = $region68
        $region67: #{tpu_custom_call.1} parent=47 // pred_region
          %515 = vsyncadd %s507, 0
          %s516 = smul.addr %s30, 8
          %s517 = scalar_lea.hbm %s7, %s516
          %s519 = sshll.u32 %s510, 4
          %s520 = int_to_ptr.vmem [resolvable:$true] %s519
          %s521 = sshll.u32 %s517, 4
          %s522 = int_to_ptr.hbm [resolvable:$true] %s521
          %524 = dma.vmem_to_hbm [thread:$0]  %s520, 128, %s522, %s507
        $region68: #{tpu_custom_call.1} parent=47 // pred_fallthru
          _
      $region48: #{tpu_custom_call.1} parent=5 // pred_fallthru
        _
      %p525 = scmp.le.s32.totalorder 2, %s21
      // Predicated region
      $region69: #{tpu_custom_call.1} parent=5 // pred_check
        %p526 = pneg %p525
      $region70: #{tpu_custom_call.1} parent=5 // pred_check_branch
        %528 = sbr.rel (%p526) target = $region72
      $region71: #{tpu_custom_call.1} parent=5 // pred_region
        %s529 = ssub.s32 %s21, 2
        // Predicated region
        $region73: #{tpu_custom_call.1} parent=71 // pred_check
          %p530 = pneg %p229
        $region74: #{tpu_custom_call.1} parent=71 // pred_check_branch
          %532 = sbr.rel (%p530) target = $region76
        $region75: #{tpu_custom_call.1} parent=71 // pred_region
          %s533 = sand.u32 %s214, 1
          %s534 = scalar_lea.sflag [#allocation4], %s533
          %s535 = sand.u32 %s214, 1
          %s536 = smul.addr %s535, 8
          %s537 = scalar_lea.vmem [#allocation10], %s536
          %539 = dma.done %s534, 128
        $region76: #{tpu_custom_call.1} parent=71 // pred_fallthru
          _
      $region72: #{tpu_custom_call.1} parent=5 // pred_fallthru
        _
    $region6: #{tpu_custom_call.1} parent=1 // loop_footer
      %s25 = sadd.s32 1, %s21
    $region7: #{tpu_custom_call.1} parent=1 // loop_footer_branch
      %20 = sbr.rel target = $region3
    $region8: #{tpu_custom_call.1} parent=1 // loop_exit
      _
    %540 = vsyncpa [#allocation3], 1
    %s541 = scalar_lea.sflag [#allocation3], 1
    %542 = vsyncpa %s541, 1
    %543 = vsyncpa [#allocation6], 1
    %544 = vsyncpa [#allocation9], 1
    %545 = vsyncpa [#allocation4], 1
    %s546 = scalar_lea.sflag [#allocation4], 1
    %547 = vsyncpa %s546, 1

</llo_original>
